<compile_context>
chip_gen: v7x
topology: tpu7x:2x2x1
jax: 0.10.0
libtpu: 0.0.40
codegen_flags: <defaults>
</compile_context>

<pallas_src>
import numpy as np

import jax
import jax.numpy as jnp
from jax import lax
from jax.experimental import pallas as pl
from jax.experimental.pallas import tpu as pltpu  # noqa: F401  (TPU backend)

KSIZE = 4     # all layers use a 4x4 kernel
STRIDE = 2
PAD = 1
NTAPS = KSIZE            # vertical kernel taps
LANE = 128               # lane padding for every tap block / activation
TCOLS = NTAPS * LANE     # 512


# ----------------------- one-time weight pre-transform ---------------------- #

def _conv_factors(w, b, h_in, w_in, n):
    """Conv2d(k=4,s=2,p=1), PyTorch OIHW weight -> per-tap (S, T) factors + bias."""
    w = np.asarray(w, np.float32)
    b = np.asarray(b, np.float32)
    c_out, c_in, kh, kw = w.shape
    h_out, w_out = h_in // STRIDE, w_in // STRIDE
    S = np.zeros((kh, n * h_out, n * h_in), np.float32)
    for i in range(kh):
        for nn in range(n):
            for ho in range(h_out):
                hi = STRIDE * ho + i - PAD
                if 0 <= hi < h_in:
                    S[i, nn * h_out + ho, nn * h_in + hi] = 1.0
    T = np.zeros((kh, w_in * c_in, w_out * c_out), np.float32)
    for i in range(kh):
        for wo in range(w_out):
            for j in range(kw):
                wi = STRIDE * wo + j - PAD
                if 0 <= wi < w_in:
                    T[i, wi * c_in:(wi + 1) * c_in,
                      wo * c_out:(wo + 1) * c_out] = w[:, :, i, j].T
    bias = np.tile(b, w_out)[None, :]                      # (1, W_out*C_out)
    return S, T, bias, h_out, w_out, c_out


def _convT_factors(w, b, h_in, w_in, n):
    """ConvTranspose2d(k=4,s=2,p=1), PyTorch (Cin,Cout,kh,kw) weight -> factors."""
    w = np.asarray(w, np.float32)
    b = np.asarray(b, np.float32)
    c_in, c_out, kh, kw = w.shape
    h_out, w_out = h_in * STRIDE, w_in * STRIDE
    # y[ho,wo,co] = sum_{hi,wi,ci} x[hi,wi,ci] * w[ci,co, ho+PAD-2hi, wo+PAD-2wi]
    S = np.zeros((kh, n * h_out, n * h_in), np.float32)
    for ki in range(kh):
        for nn in range(n):
            for ho in range(h_out):
                num = ho + PAD - ki
                if num % STRIDE == 0:
                    hi = num // STRIDE
                    if 0 <= hi < h_in:
                        S[ki, nn * h_out + ho, nn * h_in + hi] = 1.0
    T = np.zeros((kh, w_in * c_in, w_out * c_out), np.float32)
    for ki in range(kh):
        for wo in range(w_out):
            for kj in range(kw):
                num = wo + PAD - kj
                if num % STRIDE == 0:
                    wi = num // STRIDE
                    if 0 <= wi < w_in:
                        T[ki, wi * c_in:(wi + 1) * c_in,
                          wo * c_out:(wo + 1) * c_out] = w[:, :, ki, kj]
    bias = np.tile(b, w_out)[None, :]
    return S, T, bias, h_out, w_out, c_out


def _round_up(v, m):
    return (v + m - 1) // m * m


# ------------------------------ Pallas kernel ------------------------------- #

def _make_kernel(meta, bias_row):
    """meta: per-layer dict of static offsets into the packed constant array."""
    def kernel(x_ref, c_ref, o_ref):
        h = x_ref[...]                                          # (rows, k_in_0)
        for m in meta:
            # One big lane-padded matmul against T_cat = [T_0|T_1|T_2|T_3].
            t_cat = c_ref[m["t_off"]:m["t_off"] + m["k_in"], :]  # (k_in, 512)
            z = jnp.dot(h, t_cat, preferred_element_type=jnp.float32)   # (r_in, 512)
            # Stack the 4 lane-aligned tap blocks along sublanes.
            z_tall = jnp.concatenate(
                [z[:, i * LANE:(i + 1) * LANE] for i in range(NTAPS)],
                axis=0)                                          # (4*r_in, 128)
            # One fused selection/shift/interleave matmul (0/1 S_wide matrix).
            s_wide = c_ref[m["s_off"]:m["s_off"] + m["r_out"],
                           0:NTAPS * m["r_in"]]                  # (r_out, 4*r_in)
            y = jnp.dot(s_wide, z_tall,
                        preferred_element_type=jnp.float32)      # (r_out, 128)
            bias = c_ref[bias_row:bias_row + 1,
                         m["b_col"]:m["b_col"] + LANE]           # (1, 128)
            h = jnp.maximum(y + bias, 0.0)
        o_ref[...] = h                                           # (32, 128) full-lane store
    return kernel


# ------------------------------ Model wrapper -------------------------------- #

def init_params(key):
    keys = jax.random.split(key, 8)
    scale = 0.1
    return {
        # encoder (Conv2d weights are OIHW)
        "w0": jax.random.normal(keys[0], (16, 3, 4, 4), jnp.float32) * scale,
        "b0": jax.random.normal(keys[1], (16,), jnp.float32) * scale,
        "w1": jax.random.normal(keys[2], (16, 16, 4, 4), jnp.float32) * scale,
        "b1": jax.random.normal(keys[3], (16,), jnp.float32) * scale,
        # decoder (ConvTranspose2d weights are (C_in, C_out, kh, kw))
        "w2": jax.random.normal(keys[4], (16, 16, 4, 4), jnp.float32) * scale,
        "b2": jax.random.normal(keys[5], (16,), jnp.float32) * scale,
        "w3": jax.random.normal(keys[6], (16, 3, 4, 4), jnp.float32) * scale,
        "b3": jax.random.normal(keys[7], (3,), jnp.float32) * scale,
    }


def build_forward(params, n, c_in, h_in, w_in):
    # Pre-transform all weights once (numpy, eager, off the jit hot path).
    S0, T0, B0, h1, w1, c1 = _conv_factors(params["w0"], params["b0"], h_in, w_in, n)
    S1, T1, B1, h2, w2, c2 = _conv_factors(params["w1"], params["b1"], h1, w1, n)
    S2, T2, B2, h3, w3, c3 = _convT_factors(params["w2"], params["b2"], h2, w2, n)
    S3, T3, B3, h4, w4, c4 = _convT_factors(params["w3"], params["b3"], h3, w3, n)

    layers = [(S0, T0, B0), (S1, T1, B1), (S2, T2, B2), (S3, T3, B3)]
    for _, T, _ in layers:
        assert T.shape[2] <= LANE  # every padded output fits in one 128-lane block

    # Lane width of the activation feeding each layer inside the kernel:
    # raw input width for layer 0, then always LANE (padded) afterwards.
    in_widths = [w_in * c_in, LANE, LANE, LANE]

    # ---- pack everything (T_cat blocks, S_wide blocks, biases) into ONE array ----
    meta = []
    blocks = []      # (row_offset, numpy block)
    row = 0
    for l, (S, T, B) in enumerate(layers):
        taps, k_in_real, k_out = T.shape
        k_in = in_widths[l]
        assert k_in_real <= k_in and k_in % 8 == 0
        tblk = np.zeros((k_in, TCOLS), np.float32)
        for t in range(taps):
            tblk[:k_in_real, t * LANE:t * LANE + k_out] = T[t]
        meta.append({"t_off": row, "k_in": k_in})
        blocks.append((row, tblk))
        row += k_in
    for l, (S, T, B) in enumerate(layers):
        taps, r_out, r_in = S.shape
        assert r_out % 8 == 0 and NTAPS * r_in <= TCOLS
        sblk = np.zeros((r_out, TCOLS), np.float32)
        for t in range(taps):
            sblk[:, t * r_in:(t + 1) * r_in] = S[t]
        meta[l].update({"s_off": row, "r_out": r_out, "r_in": r_in})
        blocks.append((row, sblk))
        row += r_out
    bias_row = row
    brow = np.zeros((1, TCOLS), np.float32)
    for l, (S, T, B) in enumerate(layers):
        k_out = T.shape[2]
        brow[0, l * LANE:l * LANE + k_out] = np.asarray(B, np.float32).reshape(-1)
        meta[l]["b_col"] = l * LANE
    blocks.append((row, brow))
    row += 1

    total_rows = _round_up(row, 8)
    const_np = np.zeros((total_rows, TCOLS), np.float32)
    for off, blk in blocks:
        const_np[off:off + blk.shape[0], :blk.shape[1]] = blk
    const = jnp.asarray(const_np)

    out_rows = meta[-1]["r_out"]          # n * h4 = 32
    out_cols_real = w4 * c4               # 48 (lane-padded to 128 in-kernel)

    # Advisory cost estimate (kernel is tiny / launch-latency bound).
    flops = 0
    for m in meta:
        flops += 2 * m["r_in"] * m["k_in"] * TCOLS          # X @ T_cat
        flops += 2 * m["r_out"] * NTAPS * m["r_in"] * LANE  # S_wide @ Z_tall
    bytes_accessed = (n * c_in * h_in * w_in + const_np.size + out_rows * LANE) * 4

    fused = pl.pallas_call(
        _make_kernel(meta, bias_row),
        out_shape=jax.ShapeDtypeStruct((out_rows, LANE), jnp.float32),
        cost_estimate=pl.CostEstimate(flops=int(flops), transcendentals=0,
                                      bytes_accessed=int(bytes_accessed)),
    )

    @jax.jit
    def forward(x, const_arr):
        # NCHW -> (N*H, W*C) once at the model boundary.
        x2d = jnp.transpose(x, (0, 2, 3, 1)).reshape(n * h_in, w_in * c_in)
        y2d = fused(x2d, const_arr)                 # (32, 128) lane-padded
        y2d = y2d[:, :out_cols_real]                # strip lane padding (48 real lanes)
        return jnp.transpose(y2d.reshape(n, h4, w4, c4), (0, 3, 1, 2))

    return forward, const


# ---------------------------- Reference (XLA) -------------------------------- #

def _ref_conv(x, w, b, stride, padding):
    y = lax.conv_general_dilated(
        x, w, window_strides=(stride, stride),
        padding=((padding, padding), (padding, padding)),
        dimension_numbers=("NCHW", "OIHW", "NCHW"))
    return jnp.maximum(y + b.reshape(1, -1, 1, 1), 0.0)


def _ref_convT(x, w, b, stride, padding):
    kh = w.shape[2]
    w_conv = jnp.flip(w, axis=(2, 3)).transpose(1, 0, 2, 3)
    y = lax.conv_general_dilated(
        x, w_conv, window_strides=(1, 1),
        padding=((kh - 1 - padding,) * 2, (kh - 1 - padding,) * 2),
        lhs_dilation=(stride, stride),
        dimension_numbers=("NCHW", "OIHW", "NCHW"))
    return jnp.maximum(y + b.reshape(1, -1, 1, 1), 0.0)


def reference_forward(params, x):
    x = _ref_conv(x, params["w0"], params["b0"], 2, 1)
    x = _ref_conv(x, params["w1"], params["b1"], 2, 1)
    x = _ref_convT(x, params["w2"], params["b2"], 2, 1)
    x = _ref_convT(x, params["w3"], params["b3"], 2, 1)
    return x


# ------------------------------- main ---------------------------------------- #

if __name__ == "__main__":
    key = jax.random.PRNGKey(0)
    k_params, k_x = jax.random.split(key)
    params = init_params(k_params)

    n, c_in, h_in, w_in = 2, 3, 16, 16
    x = jax.random.normal(k_x, (n, c_in, h_in, w_in), jnp.float32)

    forward, const = build_forward(params, n, c_in, h_in, w_in)
    out = jax.block_until_ready(forward(x, const))

    assert out.shape == (n, c_in, h_in, w_in), out.shape
    ref = reference_forward(params, x)
    max_err = float(jnp.max(jnp.abs(out - ref)))
    assert jnp.allclose(out, ref, atol=1e-4, rtol=1e-4), max_err

    print("KERNEL_OK")
</pallas_src>

<mosaic_0001>
module attributes {stable_mosaic.version = 11 : i64} {
  func.func @kernel(%arg0: memref<32x48xf32, #tpu.memory_space<vmem>>, %arg1: memref<512x512xf32, #tpu.memory_space<vmem>>, %arg2: memref<32x128xf32, #tpu.memory_space<vmem>>) attributes {dimension_semantics = [], scalar_prefetch = 0 : i64, scratch_operands = 0 : i64, tpu.core_type = #tpu.core_type<tc>} {
    %c0 = arith.constant 0 : index
    %c0_0 = arith.constant 0 : index
    %0 = vector.load %arg0[%c0, %c0_0] : memref<32x48xf32, #tpu.memory_space<vmem>>, vector<32x48xf32>
    %c0_1 = arith.constant 0 : index
    %c0_2 = arith.constant 0 : index
    %1 = vector.load %arg1[%c0_1, %c0_2] : memref<512x512xf32, #tpu.memory_space<vmem>>, vector<48x512xf32>
    %cst = arith.constant dense<0.000000e+00> : vector<32x512xf32>
    %2 = tpu.matmul %0, %1, %cst {dimension_numbers = #tpu.dot_dimension_numbers<[1], [0], [0], [1], [0, 0, 1, 1], [], []>} : vector<32x48xf32>, vector<48x512xf32>, vector<32x512xf32> -> vector<32x512xf32>
    %3 = vector.extract_strided_slice %2 {offsets = [0, 0], sizes = [32, 128], strides = [1, 1]} : vector<32x512xf32> to vector<32x128xf32>
    %4 = vector.extract_strided_slice %2 {offsets = [0, 128], sizes = [32, 128], strides = [1, 1]} : vector<32x512xf32> to vector<32x128xf32>
    %5 = vector.extract_strided_slice %2 {offsets = [0, 256], sizes = [32, 128], strides = [1, 1]} : vector<32x512xf32> to vector<32x128xf32>
    %6 = vector.extract_strided_slice %2 {offsets = [0, 384], sizes = [32, 128], strides = [1, 1]} : vector<32x512xf32> to vector<32x128xf32>
    %7 = tpu.concatenate %3, %4, %5, %6 in 0 : vector<32x128xf32>, vector<32x128xf32>, vector<32x128xf32>, vector<32x128xf32> -> vector<128x128xf32>
    %c432 = arith.constant 432 : index
    %c0_3 = arith.constant 0 : index
    %8 = vector.load %arg1[%c432, %c0_3] : memref<512x512xf32, #tpu.memory_space<vmem>>, vector<16x128xf32>
    %cst_4 = arith.constant dense<0.000000e+00> : vector<16x128xf32>
    %9 = tpu.matmul %8, %7, %cst_4 {dimension_numbers = #tpu.dot_dimension_numbers<[1], [0], [0], [1], [0, 0, 1, 1], [], []>} : vector<16x128xf32>, vector<128x128xf32>, vector<16x128xf32> -> vector<16x128xf32>
    %c504 = arith.constant 504 : index
    %c0_5 = arith.constant 0 : index
    %10 = vector.load %arg1[%c504, %c0_5] : memref<512x512xf32, #tpu.memory_space<vmem>>, vector<1x128xf32>
    %11 = vector.broadcast %10 : vector<1x128xf32> to vector<16x128xf32>
    %12 = arith.addf %9, %11 : vector<16x128xf32>
    %cst_6 = arith.constant 0.000000e+00 : f32
    %13 = vector.broadcast %cst_6 : f32 to vector<16x128xf32>
    %14 = arith.maximumf %12, %13 : vector<16x128xf32>
    %c48 = arith.constant 48 : index
    %c0_7 = arith.constant 0 : index
    %15 = vector.load %arg1[%c48, %c0_7] : memref<512x512xf32, #tpu.memory_space<vmem>>, vector<128x512xf32>
    %cst_8 = arith.constant dense<0.000000e+00> : vector<16x512xf32>
    %16 = tpu.matmul %14, %15, %cst_8 {dimension_numbers = #tpu.dot_dimension_numbers<[1], [0], [0], [1], [0, 0, 1, 1], [], []>} : vector<16x128xf32>, vector<128x512xf32>, vector<16x512xf32> -> vector<16x512xf32>
    %17 = vector.extract_strided_slice %16 {offsets = [0, 0], sizes = [16, 128], strides = [1, 1]} : vector<16x512xf32> to vector<16x128xf32>
    %18 = vector.extract_strided_slice %16 {offsets = [0, 128], sizes = [16, 128], strides = [1, 1]} : vector<16x512xf32> to vector<16x128xf32>
    %19 = vector.extract_strided_slice %16 {offsets = [0, 256], sizes = [16, 128], strides = [1, 1]} : vector<16x512xf32> to vector<16x128xf32>
    %20 = vector.extract_strided_slice %16 {offsets = [0, 384], sizes = [16, 128], strides = [1, 1]} : vector<16x512xf32> to vector<16x128xf32>
    %21 = tpu.concatenate %17, %18, %19, %20 in 0 : vector<16x128xf32>, vector<16x128xf32>, vector<16x128xf32>, vector<16x128xf32> -> vector<64x128xf32>
    %c448 = arith.constant 448 : index
    %c0_9 = arith.constant 0 : index
    %22 = vector.load %arg1[%c448, %c0_9] : memref<512x512xf32, #tpu.memory_space<vmem>>, vector<8x64xf32>
    %cst_10 = arith.constant dense<0.000000e+00> : vector<8x128xf32>
    %23 = tpu.matmul %22, %21, %cst_10 {dimension_numbers = #tpu.dot_dimension_numbers<[1], [0], [0], [1], [0, 0, 1, 1], [], []>} : vector<8x64xf32>, vector<64x128xf32>, vector<8x128xf32> -> vector<8x128xf32>
    %c504_11 = arith.constant 504 : index
    %c128 = arith.constant 128 : index
    %24 = vector.load %arg1[%c504_11, %c128] : memref<512x512xf32, #tpu.memory_space<vmem>>, vector<1x128xf32>
    %25 = vector.broadcast %24 : vector<1x128xf32> to vector<8x128xf32>
    %26 = arith.addf %23, %25 : vector<8x128xf32>
    %cst_12 = arith.constant 0.000000e+00 : f32
    %27 = vector.broadcast %cst_12 : f32 to vector<8x128xf32>
    %28 = arith.maximumf %26, %27 : vector<8x128xf32>
    %c176 = arith.constant 176 : index
    %c0_13 = arith.constant 0 : index
    %29 = vector.load %arg1[%c176, %c0_13] : memref<512x512xf32, #tpu.memory_space<vmem>>, vector<128x512xf32>
    %cst_14 = arith.constant dense<0.000000e+00> : vector<8x512xf32>
    %30 = tpu.matmul %28, %29, %cst_14 {dimension_numbers = #tpu.dot_dimension_numbers<[1], [0], [0], [1], [0, 0, 1, 1], [], []>} : vector<8x128xf32>, vector<128x512xf32>, vector<8x512xf32> -> vector<8x512xf32>
    %31 = vector.extract_strided_slice %30 {offsets = [0, 0], sizes = [8, 128], strides = [1, 1]} : vector<8x512xf32> to vector<8x128xf32>
    %32 = vector.extract_strided_slice %30 {offsets = [0, 128], sizes = [8, 128], strides = [1, 1]} : vector<8x512xf32> to vector<8x128xf32>
    %33 = vector.extract_strided_slice %30 {offsets = [0, 256], sizes = [8, 128], strides = [1, 1]} : vector<8x512xf32> to vector<8x128xf32>
    %34 = vector.extract_strided_slice %30 {offsets = [0, 384], sizes = [8, 128], strides = [1, 1]} : vector<8x512xf32> to vector<8x128xf32>
    %35 = tpu.concatenate %31, %32, %33, %34 in 0 : vector<8x128xf32>, vector<8x128xf32>, vector<8x128xf32>, vector<8x128xf32> -> vector<32x128xf32>
    %c456 = arith.constant 456 : index
    %c0_15 = arith.constant 0 : index
    %36 = vector.load %arg1[%c456, %c0_15] : memref<512x512xf32, #tpu.memory_space<vmem>>, vector<16x32xf32>
    %cst_16 = arith.constant dense<0.000000e+00> : vector<16x128xf32>
    %37 = tpu.matmul %36, %35, %cst_16 {dimension_numbers = #tpu.dot_dimension_numbers<[1], [0], [0], [1], [0, 0, 1, 1], [], []>} : vector<16x32xf32>, vector<32x128xf32>, vector<16x128xf32> -> vector<16x128xf32>
    %c504_17 = arith.constant 504 : index
    %c256 = arith.constant 256 : index
    %38 = vector.load %arg1[%c504_17, %c256] : memref<512x512xf32, #tpu.memory_space<vmem>>, vector<1x128xf32>
    %39 = vector.broadcast %38 : vector<1x128xf32> to vector<16x128xf32>
    %40 = arith.addf %37, %39 : vector<16x128xf32>
    %cst_18 = arith.constant 0.000000e+00 : f32
    %41 = vector.broadcast %cst_18 : f32 to vector<16x128xf32>
    %42 = arith.maximumf %40, %41 : vector<16x128xf32>
    %c304 = arith.constant 304 : index
    %c0_19 = arith.constant 0 : index
    %43 = vector.load %arg1[%c304, %c0_19] : memref<512x512xf32, #tpu.memory_space<vmem>>, vector<128x512xf32>
    %cst_20 = arith.constant dense<0.000000e+00> : vector<16x512xf32>
    %44 = tpu.matmul %42, %43, %cst_20 {dimension_numbers = #tpu.dot_dimension_numbers<[1], [0], [0], [1], [0, 0, 1, 1], [], []>} : vector<16x128xf32>, vector<128x512xf32>, vector<16x512xf32> -> vector<16x512xf32>
    %45 = vector.extract_strided_slice %44 {offsets = [0, 0], sizes = [16, 128], strides = [1, 1]} : vector<16x512xf32> to vector<16x128xf32>
    %46 = vector.extract_strided_slice %44 {offsets = [0, 128], sizes = [16, 128], strides = [1, 1]} : vector<16x512xf32> to vector<16x128xf32>
    %47 = vector.extract_strided_slice %44 {offsets = [0, 256], sizes = [16, 128], strides = [1, 1]} : vector<16x512xf32> to vector<16x128xf32>
    %48 = vector.extract_strided_slice %44 {offsets = [0, 384], sizes = [16, 128], strides = [1, 1]} : vector<16x512xf32> to vector<16x128xf32>
    %49 = tpu.concatenate %45, %46, %47, %48 in 0 : vector<16x128xf32>, vector<16x128xf32>, vector<16x128xf32>, vector<16x128xf32> -> vector<64x128xf32>
    %c472 = arith.constant 472 : index
    %c0_21 = arith.constant 0 : index
    %50 = vector.load %arg1[%c472, %c0_21] : memref<512x512xf32, #tpu.memory_space<vmem>>, vector<32x64xf32>
    %cst_22 = arith.constant dense<0.000000e+00> : vector<32x128xf32>
    %51 = tpu.matmul %50, %49, %cst_22 {dimension_numbers = #tpu.dot_dimension_numbers<[1], [0], [0], [1], [0, 0, 1, 1], [], []>} : vector<32x64xf32>, vector<64x128xf32>, vector<32x128xf32> -> vector<32x128xf32>
    %c504_23 = arith.constant 504 : index
    %c384 = arith.constant 384 : index
    %52 = vector.load %arg1[%c504_23, %c384] : memref<512x512xf32, #tpu.memory_space<vmem>>, vector<1x128xf32>
    %53 = vector.broadcast %52 : vector<1x128xf32> to vector<32x128xf32>
    %54 = arith.addf %51, %53 : vector<32x128xf32>
    %cst_24 = arith.constant 0.000000e+00 : f32
    %55 = vector.broadcast %cst_24 : f32 to vector<32x128xf32>
    %56 = arith.maximumf %54, %55 : vector<32x128xf32>
    %c0_25 = arith.constant 0 : index
    %c0_26 = arith.constant 0 : index
    %57 = vector.load %arg2[%c0_25, %c0_26] : memref<32x128xf32, #tpu.memory_space<vmem>>, vector<32x128xf32>
    tpu.vector_store %arg2[%c0_25, %c0_26], %56 {strides = array<i32>} : memref<32x128xf32, #tpu.memory_space<vmem>>, vector<32x128xf32>,
    return
  }
}

</mosaic_0001>

<llo_original>
// kernel: forward.1
$region0: #{forward.1}
  #allocation0 [shape = 'u32[]', space=smem, size = 0x4, offset = 0x4, fixed_abs, tag = 'smem constant byte address 0x4 - core index']
  #allocation1 [shape = 'u32[144,128]{1,0:T(1,128)}', space=vmem, size = 0x12000, scoped, tag = 'internal scratch']
  %s0 = inlined_call_operand.vmem [shape: f32[32,48], index: 0, kind: input, shape index: {}]
  %s1 = inlined_call_operand.hbm [shape: f32[512,512], index: 1, kind: input, shape index: {}]
  %s2 = inlined_call_operand.vmem [shape: f32[32,128], index: 2, kind: output, shape index: {}]
  %s3 = sld [smem:[#allocation0]]
  $region22: #{forward.1} parent=0
    _
  %s5 = ssub.s32 1, %s3
  %s6 = scalar_select 0, %s5, %s3
  $region1: #{forward.1} parent=0
    #allocation2 [shape = 'u8[1048576]{0}', space=vmem, size = 0x100000, scoped, tag = 'input window, operand 1, single buffered']
    #allocation3 [shape = 's32[1]{0}', space=sflag, size = 0x4, scoped, tag = 'scoped memory for forward.1']
    %7 = vsyncpa [#allocation3], 0
    // Predicated region
    $region2: #{forward.1} parent=1 // pred_check
      _
    $region3: #{forward.1} parent=1 // pred_check_branch
      %9 = sbr.rel (0) target = $region5
    $region4: #{forward.1} parent=1 // pred_region
      _
    $region5: #{forward.1} parent=1 // pred_fallthru
      _
    // Predicated region
    $region6: #{forward.1} parent=1 // pred_check
      _
    $region7: #{forward.1} parent=1 // pred_check_branch
      %11 = sbr.rel (0) target = $region9
    $region8: #{forward.1} parent=1 // pred_region
      %s13 = ssub.s32 32768, 32768
      %14 = vsyncadd [#allocation3], %s13
      %s15 = sshll.u32 [#allocation2], 4
      %s16 = int_to_ptr.vmem [resolvable:$true] %s15
      %21 = dma.hbm_to_vmem [thread:$0]  %s1, 32768, %s16, [#allocation3], 512, 512, 32
    $region9: #{forward.1} parent=1 // pred_fallthru
      _
    // Predicated region
    $region10: #{forward.1} parent=1 // pred_check
      _
    $region11: #{forward.1} parent=1 // pred_check_branch
      %23 = sbr.rel (0) target = $region13
    $region12: #{forward.1} parent=1 // pred_region
      %24 = dma.done [#allocation3], 32768
    $region13: #{forward.1} parent=1 // pred_fallthru
      _
    %v25 = vld [vmem:[%s0] sm:$0xff]
    %v26 = vld [vmem:[%s0 + $0x8] sm:$0xff]
    %v27 = vld [vmem:[%s0 + $0x10] sm:$0xff]
    %v28 = vld [vmem:[%s0 + $0x18] sm:$0xff]
    %v29 = vld [vmem:[#allocation2] sm:$0xff]
    %v30 = vld [vmem:[#allocation2 + $0x8] sm:$0xff]
    %v31 = vld [vmem:[#allocation2 + $0x10] sm:$0xff]
    %v32 = vld [vmem:[#allocation2 + $0x18] sm:$0xff]
    %v33 = vld [vmem:[#allocation2 + $0x20] sm:$0xff]
    %v34 = vld [vmem:[#allocation2 + $0x28] sm:$0xff]
    %v35 = vld [vmem:[#allocation2 + $0x30] sm:$0xff]
    %v36 = vld [vmem:[#allocation2 + $0x38] sm:$0xff]
    %v37 = vld [vmem:[#allocation2 + $0x40] sm:$0xff]
    %v38 = vld [vmem:[#allocation2 + $0x48] sm:$0xff]
    %v39 = vld [vmem:[#allocation2 + $0x50] sm:$0xff]
    %v40 = vld [vmem:[#allocation2 + $0x58] sm:$0xff]
    %v41 = vld [vmem:[#allocation2 + $0x60] sm:$0xff]
    %v42 = vld [vmem:[#allocation2 + $0x68] sm:$0xff]
    %v43 = vld [vmem:[#allocation2 + $0x70] sm:$0xff]
    %v44 = vld [vmem:[#allocation2 + $0x78] sm:$0xff]
    %v45 = vld [vmem:[#allocation2 + $0x80] sm:$0xff]
    %v46 = vld [vmem:[#allocation2 + $0x88] sm:$0xff]
    %v47 = vld [vmem:[#allocation2 + $0x90] sm:$0xff]
    %v48 = vld [vmem:[#allocation2 + $0x98] sm:$0xff]
    %v49 = vld [vmem:[#allocation2 + $0xa0] sm:$0xff]
    %v50 = vld [vmem:[#allocation2 + $0xa8] sm:$0xff]
    %v51 = vld [vmem:[#allocation2 + $0xb0] sm:$0xff]
    %v52 = vld [vmem:[#allocation2 + $0xb8] sm:$0xff]
    %vm53 = vcmask 392192
    %v55 = vsel %vm53, %v25, 0
    %v58 = vsel %vm53, %v26, 0
    %v61 = vsel %vm53, %v27, 0
    %v64 = vsel %vm53, %v28, 0
    %66 = vmatprep.subr.mxu0 %v30
    %67 = vmatpush1.msra.mxu0 %v29
    %68 = vmatprep.subr.mxu0 %v34
    %69 = vmatpush1.msra.mxu0 %v33
    %70 = vmatprep.subr.mxu0 %v38
    %71 = vmatpush1.msra.mxu0 %v37
    %72 = vmatprep.subr.mxu0 %v42
    %73 = vmatpush1.msra.mxu0 %v41
    %74 = vmatprep.subr.mxu0 %v46
    %75 = vmatpush1.msra.mxu0 %v45
    %76 = vmatprep.subr.mxu0 %v50
    %77 = vmatpush1.msra.mxu0 %v49
    %78 = vmatprep.subr.mxu0 0.0
    %79 = vmatpush1.msra.mxu0 0.0
    %80 = vmatprep.subr.mxu0 0.0
    %81 = vmatpush1.msra.mxu0 0.0
    %82 = vmatprep.subr.mxu0 0.0
    %83 = vmatpush1.msra.mxu0 0.0
    %84 = vmatprep.subr.mxu0 0.0
    %85 = vmatpush1.msra.mxu0 0.0
    %86 = vmatprep.subr.mxu0 0.0
    %87 = vmatpush1.msra.mxu0 0.0
    %88 = vmatprep.subr.mxu0 0.0
    %89 = vmatpush1.msra.mxu0 0.0
    %90 = vmatprep.subr.mxu0 0.0
    %91 = vmatpush1.msra.mxu0 0.0
    %92 = vmatprep.subr.mxu0 0.0
    %93 = vmatpush1.msra.mxu0 0.0
    %94 = vmatprep.subr.mxu0 0.0
    %95 = vmatpush1.msra.mxu0 0.0
    %96 = vmatprep.subr.mxu0 0.0
    %97 = vmatpush1.msra.mxu0 0.0
    %98 = vmatprep.subr.mxu0 0.0
    %99 = vmatpush1.msra.mxu0 0.0
    %100 = vmatprep.subr.mxu0 0.0
    %101 = vmatpush1.msra.mxu0 0.0
    %102 = vmatprep.subr.mxu0 0.0
    %103 = vmatpush1.msra.mxu0 0.0
    %104 = vmatprep.subr.mxu0 0.0
    %105 = vmatpush1.msra.mxu0 0.0
    %106 = vmatprep.subr.mxu0 0.0
    %107 = vmatpush1.msra.mxu0 0.0
    %108 = vmatprep.subr.mxu0 0.0
    %109 = vmatpush1.msra.mxu0 0.0
    %110 = vmatprep.subr.mxu0 0.0
    %111 = vmatpush1.msra.mxu0 0.0
    %112 = vmatprep.subr.mxu0 0.0
    %113 = vmatpush1.msra.mxu0 0.0
    %114 = vmatprep.subr.mxu0 0.0
    %115 = vmatpush1.msra.mxu0 0.0
    %116 = vmatprep.subr.mxu0 0.0
    %117 = vmatpush1.msra.mxu0 0.0
    %118 = vmatprep.subr.mxu0 0.0
    %119 = vmatpush1.msra.mxu0 0.0
    %120 = vmatprep.subr.mxu0 0.0
    %121 = vmatpush1.msra.mxu0 0.0
    %122 = vmatprep.subr.mxu0 0.0
    %123 = vmatpush1.msra.mxu0 0.0
    %124 = vmatprep.subr.mxu0 0.0
    %125 = vmatpush1.msra.mxu0 0.0
    %126 = vmatprep.subr.mxu0 0.0
    %127 = vmatpush1.msra.mxu0 0.0
    %128 = vmatprep.subr.mxu0 0.0
    %129 = vmatpush1.msra.mxu0 0.0
    %130 = vmatprep.mubr.f32.mxu0 0.0
    %131 = vmatmul.mubr.f32.gmra.mrb[0].mxu0 %v55
    %v132 = vpop.f32.mrb[0].mxu0
    %v133 = vadd.f32 0.0, %v132
    %v134 = vpop.f32.mrb[0].mxu0
    %v135 = vadd.f32 0.0, %v134
    %136 = vmatprep.mubr.f32.mxu0 0.0
    %137 = vmatmul.mubr.f32.gmra.mrb[0].mxu0 %v58
    %v138 = vpop.f32.mrb[0].mxu0
    %v139 = vadd.f32 0.0, %v138
    %v140 = vpop.f32.mrb[0].mxu0
    %v141 = vadd.f32 0.0, %v140
    %142 = vmatprep.mubr.f32.mxu0 0.0
    %143 = vmatmul.mubr.f32.gmra.mrb[0].mxu0 %v61
    %v144 = vpop.f32.mrb[0].mxu0
    %v145 = vadd.f32 0.0, %v144
    %v146 = vpop.f32.mrb[0].mxu0
    %v147 = vadd.f32 0.0, %v146
    %148 = vmatprep.mubr.f32.mxu0 0.0
    %149 = vmatmul.mubr.f32.gmra.mrb[0].mxu0 %v64
    %v150 = vpop.f32.mrb[0].mxu0
    %v151 = vadd.f32 0.0, %v150
    %v152 = vpop.f32.mrb[0].mxu0
    %v153 = vadd.f32 0.0, %v152
    %154 = vdwg.mxu0
    %155 = vmatprep.subr.mxu0 %v32
    %156 = vmatpush1.msra.mxu0 %v31
    %157 = vmatprep.subr.mxu0 %v36
    %158 = vmatpush1.msra.mxu0 %v35
    %159 = vmatprep.subr.mxu0 %v40
    %160 = vmatpush1.msra.mxu0 %v39
    %161 = vmatprep.subr.mxu0 %v44
    %162 = vmatpush1.msra.mxu0 %v43
    %163 = vmatprep.subr.mxu0 %v48
    %164 = vmatpush1.msra.mxu0 %v47
    %165 = vmatprep.subr.mxu0 %v52
    %166 = vmatpush1.msra.mxu0 %v51
    %167 = vmatprep.subr.mxu0 0.0
    %168 = vmatpush1.msra.mxu0 0.0
    %169 = vmatprep.subr.mxu0 0.0
    %170 = vmatpush1.msra.mxu0 0.0
    %171 = vmatprep.subr.mxu0 0.0
    %172 = vmatpush1.msra.mxu0 0.0
    %173 = vmatprep.subr.mxu0 0.0
    %174 = vmatpush1.msra.mxu0 0.0
    %175 = vmatprep.subr.mxu0 0.0
    %176 = vmatpush1.msra.mxu0 0.0
    %177 = vmatprep.subr.mxu0 0.0
    %178 = vmatpush1.msra.mxu0 0.0
    %179 = vmatprep.subr.mxu0 0.0
    %180 = vmatpush1.msra.mxu0 0.0
    %181 = vmatprep.subr.mxu0 0.0
    %182 = vmatpush1.msra.mxu0 0.0
    %183 = vmatprep.subr.mxu0 0.0
    %184 = vmatpush1.msra.mxu0 0.0
    %185 = vmatprep.subr.mxu0 0.0
    %186 = vmatpush1.msra.mxu0 0.0
    %187 = vmatprep.subr.mxu0 0.0
    %188 = vmatpush1.msra.mxu0 0.0
    %189 = vmatprep.subr.mxu0 0.0
    %190 = vmatpush1.msra.mxu0 0.0
    %191 = vmatprep.subr.mxu0 0.0
    %192 = vmatpush1.msra.mxu0 0.0
    %193 = vmatprep.subr.mxu0 0.0
    %194 = vmatpush1.msra.mxu0 0.0
    %195 = vmatprep.subr.mxu0 0.0
    %196 = vmatpush1.msra.mxu0 0.0
    %197 = vmatprep.subr.mxu0 0.0
    %198 = vmatpush1.msra.mxu0 0.0
    %199 = vmatprep.subr.mxu0 0.0
    %200 = vmatpush1.msra.mxu0 0.0
    %201 = vmatprep.subr.mxu0 0.0
    %202 = vmatpush1.msra.mxu0 0.0
    %203 = vmatprep.subr.mxu0 0.0
    %204 = vmatpush1.msra.mxu0 0.0
    %205 = vmatprep.subr.mxu0 0.0
    %206 = vmatpush1.msra.mxu0 0.0
    %207 = vmatprep.subr.mxu0 0.0
    %208 = vmatpush1.msra.mxu0 0.0
    %209 = vmatprep.subr.mxu0 0.0
    %210 = vmatpush1.msra.mxu0 0.0
    %211 = vmatprep.subr.mxu0 0.0
    %212 = vmatpush1.msra.mxu0 0.0
    %213 = vmatprep.subr.mxu0 0.0
    %214 = vmatpush1.msra.mxu0 0.0
    %215 = vmatprep.subr.mxu0 0.0
    %216 = vmatpush1.msra.mxu0 0.0
    %217 = vmatprep.subr.mxu0 0.0
    %218 = vmatpush1.msra.mxu0 0.0
    %219 = vmatprep.mubr.f32.mxu0 0.0
    %220 = vmatmul.mubr.f32.gmra.mrb[0].mxu0 %v55
    %v221 = vpop.f32.mrb[0].mxu0
    %v222 = vadd.f32 0.0, %v221
    %v223 = vpop.f32.mrb[0].mxu0
    %v224 = vadd.f32 0.0, %v223
    %225 = vmatprep.mubr.f32.mxu0 0.0
    %226 = vmatmul.mubr.f32.gmra.mrb[0].mxu0 %v58
    %v227 = vpop.f32.mrb[0].mxu0
    %v228 = vadd.f32 0.0, %v227
    %v229 = vpop.f32.mrb[0].mxu0
    %v230 = vadd.f32 0.0, %v229
    %231 = vmatprep.mubr.f32.mxu0 0.0
    %232 = vmatmul.mubr.f32.gmra.mrb[0].mxu0 %v61
    %v233 = vpop.f32.mrb[0].mxu0
    %v234 = vadd.f32 0.0, %v233
    %v235 = vpop.f32.mrb[0].mxu0
    %v236 = vadd.f32 0.0, %v235
    %237 = vmatprep.mubr.f32.mxu0 0.0
    %238 = vmatmul.mubr.f32.gmra.mrb[0].mxu0 %v64
    %v239 = vpop.f32.mrb[0].mxu0
    %v240 = vadd.f32 0.0, %v239
    %v241 = vpop.f32.mrb[0].mxu0
    %v242 = vadd.f32 0.0, %v241
    %243 = vdwg.mxu0
    %v244 = vld [vmem:[#allocation2 + $0x6c0] sm:$0xff]
    %v245 = vld [vmem:[#allocation2 + $0x6e0] sm:$0xff]
    %v246 = vld [vmem:[#allocation2 + $0x7e0] ss:$0 sm:$0xff]
    %247 = vmatprep.subr.mxu0 0.0
    %248 = vmatpush1.msra.mxu0 %v133
    %249 = vmatprep.subr.mxu0 0.0
    %250 = vmatpush1.msra.mxu0 %v139
    %251 = vmatprep.subr.mxu0 0.0
    %252 = vmatpush1.msra.mxu0 %v145
    %253 = vmatprep.subr.mxu0 0.0
    %254 = vmatpush1.msra.mxu0 %v151
    %255 = vmatprep.subr.mxu0 0.0
    %256 = vmatpush1.msra.mxu0 %v135
    %257 = vmatprep.subr.mxu0 0.0
    %258 = vmatpush1.msra.mxu0 %v141
    %259 = vmatprep.subr.mxu0 0.0
    %260 = vmatpush1.msra.mxu0 %v147
    %261 = vmatprep.subr.mxu0 0.0
    %262 = vmatpush1.msra.mxu0 %v153
    %263 = vmatprep.subr.mxu0 0.0
    %264 = vmatpush1.msra.mxu0 %v222
    %265 = vmatprep.subr.mxu0 0.0
    %266 = vmatpush1.msra.mxu0 %v228
    %267 = vmatprep.subr.mxu0 0.0
    %268 = vmatpush1.msra.mxu0 %v234
    %269 = vmatprep.subr.mxu0 0.0
    %270 = vmatpush1.msra.mxu0 %v240
    %271 = vmatprep.subr.mxu0 0.0
    %272 = vmatpush1.msra.mxu0 %v224
    %273 = vmatprep.subr.mxu0 0.0
    %274 = vmatpush1.msra.mxu0 %v230
    %275 = vmatprep.subr.mxu0 0.0
    %276 = vmatpush1.msra.mxu0 %v236
    %277 = vmatprep.subr.mxu0 0.0
    %278 = vmatpush1.msra.mxu0 %v242
    %279 = vmatprep.subr.mxu0 0.0
    %280 = vmatpush1.msra.mxu0 0.0
    %281 = vmatprep.subr.mxu0 0.0
    %282 = vmatpush1.msra.mxu0 0.0
    %283 = vmatprep.subr.mxu0 0.0
    %284 = vmatpush1.msra.mxu0 0.0
    %285 = vmatprep.subr.mxu0 0.0
    %286 = vmatpush1.msra.mxu0 0.0
    %287 = vmatprep.subr.mxu0 0.0
    %288 = vmatpush1.msra.mxu0 0.0
    %289 = vmatprep.subr.mxu0 0.0
    %290 = vmatpush1.msra.mxu0 0.0
    %291 = vmatprep.subr.mxu0 0.0
    %292 = vmatpush1.msra.mxu0 0.0
    %293 = vmatprep.subr.mxu0 0.0
    %294 = vmatpush1.msra.mxu0 0.0
    %295 = vmatprep.subr.mxu0 0.0
    %296 = vmatpush1.msra.mxu0 0.0
    %297 = vmatprep.subr.mxu0 0.0
    %298 = vmatpush1.msra.mxu0 0.0
    %299 = vmatprep.subr.mxu0 0.0
    %300 = vmatpush1.msra.mxu0 0.0
    %301 = vmatprep.subr.mxu0 0.0
    %302 = vmatpush1.msra.mxu0 0.0
    %303 = vmatprep.subr.mxu0 0.0
    %304 = vmatpush1.msra.mxu0 0.0
    %305 = vmatprep.subr.mxu0 0.0
    %306 = vmatpush1.msra.mxu0 0.0
    %307 = vmatprep.subr.mxu0 0.0
    %308 = vmatpush1.msra.mxu0 0.0
    %309 = vmatprep.subr.mxu0 0.0
    %310 = vmatpush1.msra.mxu0 0.0
    %311 = vmatprep.mubr.f32.mxu0 0.0
    %312 = vmatmul.mubr.f32.gmra.mrb[0].mxu0 %v244
    %v313 = vpop.f32.mrb[0].mxu0
    %v314 = vadd.f32 %v246, %v313
    %v315 = vpop.f32.mrb[0].mxu0
    %316 = vmatprep.mubr.f32.mxu0 0.0
    %317 = vmatmul.mubr.f32.gmra.mrb[0].mxu0 %v245
    %v318 = vpop.f32.mrb[0].mxu0
    %v319 = vadd.f32 %v246, %v318
    %v320 = vpop.f32.mrb[0].mxu0
    %321 = vdwg.mxu0
    %v322 = vmax.f32 %v314, 0.0
    %v323 = vmax.f32 %v319, 0.0
    %v324 = vld [vmem:[#allocation2 + $0xc0] sm:$0xff]
    %v325 = vld [vmem:[#allocation2 + $0xc8] sm:$0xff]
    %v326 = vld [vmem:[#allocation2 + $0xd0] sm:$0xff]
    %v327 = vld [vmem:[#allocation2 + $0xd8] sm:$0xff]
    %v328 = vld [vmem:[#allocation2 + $0xe0] sm:$0xff]
    %v329 = vld [vmem:[#allocation2 + $0xe8] sm:$0xff]
    %v330 = vld [vmem:[#allocation2 + $0xf0] sm:$0xff]
    %v331 = vld [vmem:[#allocation2 + $0xf8] sm:$0xff]
    %v332 = vld [vmem:[#allocation2 + $0x100] sm:$0xff]
    %v333 = vld [vmem:[#allocation2 + $0x108] sm:$0xff]
    %v334 = vld [vmem:[#allocation2 + $0x110] sm:$0xff]
    %v335 = vld [vmem:[#allocation2 + $0x118] sm:$0xff]
    %v336 = vld [vmem:[#allocation2 + $0x120] sm:$0xff]
    %v337 = vld [vmem:[#allocation2 + $0x128] sm:$0xff]
    %v338 = vld [vmem:[#allocation2 + $0x130] sm:$0xff]
    %v339 = vld [vmem:[#allocation2 + $0x138] sm:$0xff]
    %v340 = vld [vmem:[#allocation2 + $0x140] sm:$0xff]
    %v341 = vld [vmem:[#allocation2 + $0x148] sm:$0xff]
    %v342 = vld [vmem:[#allocation2 + $0x150] sm:$0xff]
    %v343 = vld [vmem:[#allocation2 + $0x158] sm:$0xff]
    %v344 = vld [vmem:[#allocation2 + $0x160] sm:$0xff]
    %v345 = vld [vmem:[#allocation2 + $0x168] sm:$0xff]
    %v346 = vld [vmem:[#allocation2 + $0x170] sm:$0xff]
    %v347 = vld [vmem:[#allocation2 + $0x178] sm:$0xff]
    %v348 = vld [vmem:[#allocation2 + $0x180] sm:$0xff]
    %v349 = vld [vmem:[#allocation2 + $0x188] sm:$0xff]
    %v350 = vld [vmem:[#allocation2 + $0x190] sm:$0xff]
    %v351 = vld [vmem:[#allocation2 + $0x198] sm:$0xff]
    %v352 = vld [vmem:[#allocation2 + $0x1a0] sm:$0xff]
    %v353 = vld [vmem:[#allocation2 + $0x1a8] sm:$0xff]
    %v354 = vld [vmem:[#allocation2 + $0x1b0] sm:$0xff]
    %v355 = vld [vmem:[#allocation2 + $0x1b8] sm:$0xff]
    %v356 = vld [vmem:[#allocation2 + $0x1c0] sm:$0xff]
    %v357 = vld [vmem:[#allocation2 + $0x1c8] sm:$0xff]
    %v358 = vld [vmem:[#allocation2 + $0x1d0] sm:$0xff]
    %v359 = vld [vmem:[#allocation2 + $0x1d8] sm:$0xff]
    %v360 = vld [vmem:[#allocation2 + $0x1e0] sm:$0xff]
    %v361 = vld [vmem:[#allocation2 + $0x1e8] sm:$0xff]
    %v362 = vld [vmem:[#allocation2 + $0x1f0] sm:$0xff]
    %v363 = vld [vmem:[#allocation2 + $0x1f8] sm:$0xff]
    %v364 = vld [vmem:[#allocation2 + $0x200] sm:$0xff]
    %v365 = vld [vmem:[#allocation2 + $0x208] sm:$0xff]
    %v366 = vld [vmem:[#allocation2 + $0x210] sm:$0xff]
    %v367 = vld [vmem:[#allocation2 + $0x218] sm:$0xff]
    %v368 = vld [vmem:[#allocation2 + $0x220] sm:$0xff]
    %v369 = vld [vmem:[#allocation2 + $0x228] sm:$0xff]
    %v370 = vld [vmem:[#allocation2 + $0x230] sm:$0xff]
    %v371 = vld [vmem:[#allocation2 + $0x238] sm:$0xff]
    %v372 = vld [vmem:[#allocation2 + $0x240] sm:$0xff]
    %v373 = vld [vmem:[#allocation2 + $0x248] sm:$0xff]
    %v374 = vld [vmem:[#allocation2 + $0x250] sm:$0xff]
    %v375 = vld [vmem:[#allocation2 + $0x258] sm:$0xff]
    %v376 = vld [vmem:[#allocation2 + $0x260] sm:$0xff]
    %v377 = vld [vmem:[#allocation2 + $0x268] sm:$0xff]
    %v378 = vld [vmem:[#allocation2 + $0x270] sm:$0xff]
    %v379 = vld [vmem:[#allocation2 + $0x278] sm:$0xff]
    %v380 = vld [vmem:[#allocation2 + $0x280] sm:$0xff]
    %v381 = vld [vmem:[#allocation2 + $0x288] sm:$0xff]
    %v382 = vld [vmem:[#allocation2 + $0x290] sm:$0xff]
    %v383 = vld [vmem:[#allocation2 + $0x298] sm:$0xff]
    %v384 = vld [vmem:[#allocation2 + $0x2a0] sm:$0xff]
    %v385 = vld [vmem:[#allocation2 + $0x2a8] sm:$0xff]
    %v386 = vld [vmem:[#allocation2 + $0x2b0] sm:$0xff]
    %v387 = vld [vmem:[#allocation2 + $0x2b8] sm:$0xff]
    %388 = vmatprep.subr.mxu0 %v325
    %389 = vmatpush1.msra.mxu0 %v324
    %390 = vmatprep.subr.mxu0 %v329
    %391 = vmatpush1.msra.mxu0 %v328
    %392 = vmatprep.subr.mxu0 %v333
    %393 = vmatpush1.msra.mxu0 %v332
    %394 = vmatprep.subr.mxu0 %v337
    %395 = vmatpush1.msra.mxu0 %v336
    %396 = vmatprep.subr.mxu0 %v341
    %397 = vmatpush1.msra.mxu0 %v340
    %398 = vmatprep.subr.mxu0 %v345
    %399 = vmatpush1.msra.mxu0 %v344
    %400 = vmatprep.subr.mxu0 %v349
    %401 = vmatpush1.msra.mxu0 %v348
    %402 = vmatprep.subr.mxu0 %v353
    %403 = vmatpush1.msra.mxu0 %v352
    %404 = vmatprep.subr.mxu0 %v357
    %405 = vmatpush1.msra.mxu0 %v356
    %406 = vmatprep.subr.mxu0 %v361
    %407 = vmatpush1.msra.mxu0 %v360
    %408 = vmatprep.subr.mxu0 %v365
    %409 = vmatpush1.msra.mxu0 %v364
    %410 = vmatprep.subr.mxu0 %v369
    %411 = vmatpush1.msra.mxu0 %v368
    %412 = vmatprep.subr.mxu0 %v373
    %413 = vmatpush1.msra.mxu0 %v372
    %414 = vmatprep.subr.mxu0 %v377
    %415 = vmatpush1.msra.mxu0 %v376
    %416 = vmatprep.subr.mxu0 %v381
    %417 = vmatpush1.msra.mxu0 %v380
    %418 = vmatprep.subr.mxu0 %v385
    %419 = vmatpush1.msra.mxu0 %v384
    %420 = vmatprep.subr.mxu0 0.0
    %421 = vmatpush1.msra.mxu0 0.0
    %422 = vmatprep.subr.mxu0 0.0
    %423 = vmatpush1.msra.mxu0 0.0
    %424 = vmatprep.subr.mxu0 0.0
    %425 = vmatpush1.msra.mxu0 0.0
    %426 = vmatprep.subr.mxu0 0.0
    %427 = vmatpush1.msra.mxu0 0.0
    %428 = vmatprep.subr.mxu0 0.0
    %429 = vmatpush1.msra.mxu0 0.0
    %430 = vmatprep.subr.mxu0 0.0
    %431 = vmatpush1.msra.mxu0 0.0
    %432 = vmatprep.subr.mxu0 0.0
    %433 = vmatpush1.msra.mxu0 0.0
    %434 = vmatprep.subr.mxu0 0.0
    %435 = vmatpush1.msra.mxu0 0.0
    %436 = vmatprep.subr.mxu0 0.0
    %437 = vmatpush1.msra.mxu0 0.0
    %438 = vmatprep.subr.mxu0 0.0
    %439 = vmatpush1.msra.mxu0 0.0
    %440 = vmatprep.subr.mxu0 0.0
    %441 = vmatpush1.msra.mxu0 0.0
    %442 = vmatprep.subr.mxu0 0.0
    %443 = vmatpush1.msra.mxu0 0.0
    %444 = vmatprep.subr.mxu0 0.0
    %445 = vmatpush1.msra.mxu0 0.0
    %446 = vmatprep.subr.mxu0 0.0
    %447 = vmatpush1.msra.mxu0 0.0
    %448 = vmatprep.subr.mxu0 0.0
    %449 = vmatpush1.msra.mxu0 0.0
    %450 = vmatprep.subr.mxu0 0.0
    %451 = vmatpush1.msra.mxu0 0.0
    %452 = vmatprep.mubr.f32.mxu0 0.0
    %453 = vmatmul.mubr.f32.gmra.mrb[0].mxu0 %v322
    %v454 = vpop.f32.mrb[0].mxu0
    %v455 = vadd.f32 0.0, %v454
    %v456 = vpop.f32.mrb[0].mxu0
    %v457 = vadd.f32 0.0, %v456
    %458 = vmatprep.mubr.f32.mxu0 0.0
    %459 = vmatmul.mubr.f32.gmra.mrb[0].mxu0 %v323
    %v460 = vpop.f32.mrb[0].mxu0
    %v461 = vadd.f32 0.0, %v460
    %v462 = vpop.f32.mrb[0].mxu0
    %v463 = vadd.f32 0.0, %v462
    %464 = vdwg.mxu0
    %465 = vmatprep.subr.mxu0 %v327
    %466 = vmatpush1.msra.mxu0 %v326
    %467 = vmatprep.subr.mxu0 %v331
    %468 = vmatpush1.msra.mxu0 %v330
    %469 = vmatprep.subr.mxu0 %v335
    %470 = vmatpush1.msra.mxu0 %v334
    %471 = vmatprep.subr.mxu0 %v339
    %472 = vmatpush1.msra.mxu0 %v338
    %473 = vmatprep.subr.mxu0 %v343
    %474 = vmatpush1.msra.mxu0 %v342
    %475 = vmatprep.subr.mxu0 %v347
    %476 = vmatpush1.msra.mxu0 %v346
    %477 = vmatprep.subr.mxu0 %v351
    %478 = vmatpush1.msra.mxu0 %v350
    %479 = vmatprep.subr.mxu0 %v355
    %480 = vmatpush1.msra.mxu0 %v354
    %481 = vmatprep.subr.mxu0 %v359
    %482 = vmatpush1.msra.mxu0 %v358
    %483 = vmatprep.subr.mxu0 %v363
    %484 = vmatpush1.msra.mxu0 %v362
    %485 = vmatprep.subr.mxu0 %v367
    %486 = vmatpush1.msra.mxu0 %v366
    %487 = vmatprep.subr.mxu0 %v371
    %488 = vmatpush1.msra.mxu0 %v370
    %489 = vmatprep.subr.mxu0 %v375
    %490 = vmatpush1.msra.mxu0 %v374
    %491 = vmatprep.subr.mxu0 %v379
    %492 = vmatpush1.msra.mxu0 %v378
    %493 = vmatprep.subr.mxu0 %v383
    %494 = vmatpush1.msra.mxu0 %v382
    %495 = vmatprep.subr.mxu0 %v387
    %496 = vmatpush1.msra.mxu0 %v386
    %497 = vmatprep.subr.mxu0 0.0
    %498 = vmatpush1.msra.mxu0 0.0
    %499 = vmatprep.subr.mxu0 0.0
    %500 = vmatpush1.msra.mxu0 0.0
    %501 = vmatprep.subr.mxu0 0.0
    %502 = vmatpush1.msra.mxu0 0.0
    %503 = vmatprep.subr.mxu0 0.0
    %504 = vmatpush1.msra.mxu0 0.0
    %505 = vmatprep.subr.mxu0 0.0
    %506 = vmatpush1.msra.mxu0 0.0
    %507 = vmatprep.subr.mxu0 0.0
    %508 = vmatpush1.msra.mxu0 0.0
    %509 = vmatprep.subr.mxu0 0.0
    %510 = vmatpush1.msra.mxu0 0.0
    %511 = vmatprep.subr.mxu0 0.0
    %512 = vmatpush1.msra.mxu0 0.0
    %513 = vmatprep.subr.mxu0 0.0
    %514 = vmatpush1.msra.mxu0 0.0
    %515 = vmatprep.subr.mxu0 0.0
    %516 = vmatpush1.msra.mxu0 0.0
    %517 = vmatprep.subr.mxu0 0.0
    %518 = vmatpush1.msra.mxu0 0.0
    %519 = vmatprep.subr.mxu0 0.0
    %520 = vmatpush1.msra.mxu0 0.0
    %521 = vmatprep.subr.mxu0 0.0
    %522 = vmatpush1.msra.mxu0 0.0
    %523 = vmatprep.subr.mxu0 0.0
    %524 = vmatpush1.msra.mxu0 0.0
    %525 = vmatprep.subr.mxu0 0.0
    %526 = vmatpush1.msra.mxu0 0.0
    %527 = vmatprep.subr.mxu0 0.0
    %528 = vmatpush1.msra.mxu0 0.0
    %529 = vmatprep.mubr.f32.mxu0 0.0
    %530 = vmatmul.mubr.f32.gmra.mrb[0].mxu0 %v322
    %v531 = vpop.f32.mrb[0].mxu0
    %v532 = vadd.f32 0.0, %v531
    %v533 = vpop.f32.mrb[0].mxu0
    %v534 = vadd.f32 0.0, %v533
    %535 = vmatprep.mubr.f32.mxu0 0.0
    %536 = vmatmul.mubr.f32.gmra.mrb[0].mxu0 %v323
    %v537 = vpop.f32.mrb[0].mxu0
    %v538 = vadd.f32 0.0, %v537
    %v539 = vpop.f32.mrb[0].mxu0
    %v540 = vadd.f32 0.0, %v539
    %541 = vdwg.mxu0
    %v542 = vld [vmem:[#allocation2 + $0x700] sm:$0xff]
    %v543 = vld [vmem:[#allocation2 + $0x7e8] ss:$0 sm:$0xff]
    %vm544 = vcmask 523264
    %v546 = vsel %vm544, %v542, 0
    %548 = vmatprep.subr.mxu0 0.0
    %549 = vmatpush1.msra.mxu0 %v455
    %550 = vmatprep.subr.mxu0 0.0
    %551 = vmatpush1.msra.mxu0 %v461
    %552 = vmatprep.subr.mxu0 0.0
    %553 = vmatpush1.msra.mxu0 %v457
    %554 = vmatprep.subr.mxu0 0.0
    %555 = vmatpush1.msra.mxu0 %v463
    %556 = vmatprep.subr.mxu0 0.0
    %557 = vmatpush1.msra.mxu0 %v532
    %558 = vmatprep.subr.mxu0 0.0
    %559 = vmatpush1.msra.mxu0 %v538
    %560 = vmatprep.subr.mxu0 0.0
    %561 = vmatpush1.msra.mxu0 %v534
    %562 = vmatprep.subr.mxu0 0.0
    %563 = vmatpush1.msra.mxu0 %v540
    %564 = vmatprep.subr.mxu0 0.0
    %565 = vmatpush1.msra.mxu0 0.0
    %566 = vmatprep.subr.mxu0 0.0
    %567 = vmatpush1.msra.mxu0 0.0
    %568 = vmatprep.subr.mxu0 0.0
    %569 = vmatpush1.msra.mxu0 0.0
    %570 = vmatprep.subr.mxu0 0.0
    %571 = vmatpush1.msra.mxu0 0.0
    %572 = vmatprep.subr.mxu0 0.0
    %573 = vmatpush1.msra.mxu0 0.0
    %574 = vmatprep.subr.mxu0 0.0
    %575 = vmatpush1.msra.mxu0 0.0
    %576 = vmatprep.subr.mxu0 0.0
    %577 = vmatpush1.msra.mxu0 0.0
    %578 = vmatprep.subr.mxu0 0.0
    %579 = vmatpush1.msra.mxu0 0.0
    %580 = vmatprep.subr.mxu0 0.0
    %581 = vmatpush1.msra.mxu0 0.0
    %582 = vmatprep.subr.mxu0 0.0
    %583 = vmatpush1.msra.mxu0 0.0
    %584 = vmatprep.subr.mxu0 0.0
    %585 = vmatpush1.msra.mxu0 0.0
    %586 = vmatprep.subr.mxu0 0.0
    %587 = vmatpush1.msra.mxu0 0.0
    %588 = vmatprep.subr.mxu0 0.0
    %589 = vmatpush1.msra.mxu0 0.0
    %590 = vmatprep.subr.mxu0 0.0
    %591 = vmatpush1.msra.mxu0 0.0
    %592 = vmatprep.subr.mxu0 0.0
    %593 = vmatpush1.msra.mxu0 0.0
    %594 = vmatprep.subr.mxu0 0.0
    %595 = vmatpush1.msra.mxu0 0.0
    %596 = vmatprep.subr.mxu0 0.0
    %597 = vmatpush1.msra.mxu0 0.0
    %598 = vmatprep.subr.mxu0 0.0
    %599 = vmatpush1.msra.mxu0 0.0
    %600 = vmatprep.subr.mxu0 0.0
    %601 = vmatpush1.msra.mxu0 0.0
    %602 = vmatprep.subr.mxu0 0.0
    %603 = vmatpush1.msra.mxu0 0.0
    %604 = vmatprep.subr.mxu0 0.0
    %605 = vmatpush1.msra.mxu0 0.0
    %606 = vmatprep.subr.mxu0 0.0
    %607 = vmatpush1.msra.mxu0 0.0
    %608 = vmatprep.subr.mxu0 0.0
    %609 = vmatpush1.msra.mxu0 0.0
    %610 = vmatprep.subr.mxu0 0.0
    %611 = vmatpush1.msra.mxu0 0.0
    %612 = vmatprep.mubr.f32.mxu0 0.0
    %613 = vmatmul.mubr.f32.gmra.mrb[0].mxu0 %v546
    %v614 = vpop.f32.mrb[0].mxu0
    %v615 = vadd.f32 %v543, %v614
    %v616 = vpop.f32.mrb[0].mxu0
    %617 = vdwg.mxu0
    %v618 = vmax.f32 %v615, 0.0
    %v619 = vld [vmem:[#allocation2 + $0x2c0] sm:$0xff]
    %v620 = vld [vmem:[#allocation2 + $0x2c8] sm:$0xff]
    %v621 = vld [vmem:[#allocation2 + $0x2d0] sm:$0xff]
    %v622 = vld [vmem:[#allocation2 + $0x2d8] sm:$0xff]
    %v623 = vld [vmem:[#allocation2 + $0x2e0] sm:$0xff]
    %v624 = vld [vmem:[#allocation2 + $0x2e8] sm:$0xff]
    %v625 = vld [vmem:[#allocation2 + $0x2f0] sm:$0xff]
    %v626 = vld [vmem:[#allocation2 + $0x2f8] sm:$0xff]
    %v627 = vld [vmem:[#allocation2 + $0x300] sm:$0xff]
    %v628 = vld [vmem:[#allocation2 + $0x308] sm:$0xff]
    %v629 = vld [vmem:[#allocation2 + $0x310] sm:$0xff]
    %v630 = vld [vmem:[#allocation2 + $0x318] sm:$0xff]
    %v631 = vld [vmem:[#allocation2 + $0x320] sm:$0xff]
    %v632 = vld [vmem:[#allocation2 + $0x328] sm:$0xff]
    %v633 = vld [vmem:[#allocation2 + $0x330] sm:$0xff]
    %v634 = vld [vmem:[#allocation2 + $0x338] sm:$0xff]
    %v635 = vld [vmem:[#allocation2 + $0x340] sm:$0xff]
    %v636 = vld [vmem:[#allocation2 + $0x348] sm:$0xff]
    %v637 = vld [vmem:[#allocation2 + $0x350] sm:$0xff]
    %v638 = vld [vmem:[#allocation2 + $0x358] sm:$0xff]
    %v639 = vld [vmem:[#allocation2 + $0x360] sm:$0xff]
    %v640 = vld [vmem:[#allocation2 + $0x368] sm:$0xff]
    %v641 = vld [vmem:[#allocation2 + $0x370] sm:$0xff]
    %v642 = vld [vmem:[#allocation2 + $0x378] sm:$0xff]
    %v643 = vld [vmem:[#allocation2 + $0x380] sm:$0xff]
    %v644 = vld [vmem:[#allocation2 + $0x388] sm:$0xff]
    %v645 = vld [vmem:[#allocation2 + $0x390] sm:$0xff]
    %v646 = vld [vmem:[#allocation2 + $0x398] sm:$0xff]
    %v647 = vld [vmem:[#allocation2 + $0x3a0] sm:$0xff]
    %v648 = vld [vmem:[#allocation2 + $0x3a8] sm:$0xff]
    %v649 = vld [vmem:[#allocation2 + $0x3b0] sm:$0xff]
    %v650 = vld [vmem:[#allocation2 + $0x3b8] sm:$0xff]
    %v651 = vld [vmem:[#allocation2 + $0x3c0] sm:$0xff]
    %v652 = vld [vmem:[#allocation2 + $0x3c8] sm:$0xff]
    %v653 = vld [vmem:[#allocation2 + $0x3d0] sm:$0xff]
    %v654 = vld [vmem:[#allocation2 + $0x3d8] sm:$0xff]
    %v655 = vld [vmem:[#allocation2 + $0x3e0] sm:$0xff]
    %v656 = vld [vmem:[#allocation2 + $0x3e8] sm:$0xff]
    %v657 = vld [vmem:[#allocation2 + $0x3f0] sm:$0xff]
    %v658 = vld [vmem:[#allocation2 + $0x3f8] sm:$0xff]
    %v659 = vld [vmem:[#allocation2 + $0x400] sm:$0xff]
    %v660 = vld [vmem:[#allocation2 + $0x408] sm:$0xff]
    %v661 = vld [vmem:[#allocation2 + $0x410] sm:$0xff]
    %v662 = vld [vmem:[#allocation2 + $0x418] sm:$0xff]
    %v663 = vld [vmem:[#allocation2 + $0x420] sm:$0xff]
    %v664 = vld [vmem:[#allocation2 + $0x428] sm:$0xff]
    %v665 = vld [vmem:[#allocation2 + $0x430] sm:$0xff]
    %v666 = vld [vmem:[#allocation2 + $0x438] sm:$0xff]
    %v667 = vld [vmem:[#allocation2 + $0x440] sm:$0xff]
    %v668 = vld [vmem:[#allocation2 + $0x448] sm:$0xff]
    %v669 = vld [vmem:[#allocation2 + $0x450] sm:$0xff]
    %v670 = vld [vmem:[#allocation2 + $0x458] sm:$0xff]
    %v671 = vld [vmem:[#allocation2 + $0x460] sm:$0xff]
    %v672 = vld [vmem:[#allocation2 + $0x468] sm:$0xff]
    %v673 = vld [vmem:[#allocation2 + $0x470] sm:$0xff]
    %v674 = vld [vmem:[#allocation2 + $0x478] sm:$0xff]
    %v675 = vld [vmem:[#allocation2 + $0x480] sm:$0xff]
    %v676 = vld [vmem:[#allocation2 + $0x488] sm:$0xff]
    %v677 = vld [vmem:[#allocation2 + $0x490] sm:$0xff]
    %v678 = vld [vmem:[#allocation2 + $0x498] sm:$0xff]
    %v679 = vld [vmem:[#allocation2 + $0x4a0] sm:$0xff]
    %v680 = vld [vmem:[#allocation2 + $0x4a8] sm:$0xff]
    %v681 = vld [vmem:[#allocation2 + $0x4b0] sm:$0xff]
    %v682 = vld [vmem:[#allocation2 + $0x4b8] sm:$0xff]
    %683 = vmatprep.subr.mxu0 %v620
    %684 = vmatpush1.msra.mxu0 %v619
    %685 = vmatprep.subr.mxu0 %v624
    %686 = vmatpush1.msra.mxu0 %v623
    %687 = vmatprep.subr.mxu0 %v628
    %688 = vmatpush1.msra.mxu0 %v627
    %689 = vmatprep.subr.mxu0 %v632
    %690 = vmatpush1.msra.mxu0 %v631
    %691 = vmatprep.subr.mxu0 %v636
    %692 = vmatpush1.msra.mxu0 %v635
    %693 = vmatprep.subr.mxu0 %v640
    %694 = vmatpush1.msra.mxu0 %v639
    %695 = vmatprep.subr.mxu0 %v644
    %696 = vmatpush1.msra.mxu0 %v643
    %697 = vmatprep.subr.mxu0 %v648
    %698 = vmatpush1.msra.mxu0 %v647
    %699 = vmatprep.subr.mxu0 %v652
    %700 = vmatpush1.msra.mxu0 %v651
    %701 = vmatprep.subr.mxu0 %v656
    %702 = vmatpush1.msra.mxu0 %v655
    %703 = vmatprep.subr.mxu0 %v660
    %704 = vmatpush1.msra.mxu0 %v659
    %705 = vmatprep.subr.mxu0 %v664
    %706 = vmatpush1.msra.mxu0 %v663
    %707 = vmatprep.subr.mxu0 %v668
    %708 = vmatpush1.msra.mxu0 %v667
    %709 = vmatprep.subr.mxu0 %v672
    %710 = vmatpush1.msra.mxu0 %v671
    %711 = vmatprep.subr.mxu0 %v676
    %712 = vmatpush1.msra.mxu0 %v675
    %713 = vmatprep.subr.mxu0 %v680
    %714 = vmatpush1.msra.mxu0 %v679
    %715 = vmatprep.subr.mxu0 0.0
    %716 = vmatpush1.msra.mxu0 0.0
    %717 = vmatprep.subr.mxu0 0.0
    %718 = vmatpush1.msra.mxu0 0.0
    %719 = vmatprep.subr.mxu0 0.0
    %720 = vmatpush1.msra.mxu0 0.0
    %721 = vmatprep.subr.mxu0 0.0
    %722 = vmatpush1.msra.mxu0 0.0
    %723 = vmatprep.subr.mxu0 0.0
    %724 = vmatpush1.msra.mxu0 0.0
    %725 = vmatprep.subr.mxu0 0.0
    %726 = vmatpush1.msra.mxu0 0.0
    %727 = vmatprep.subr.mxu0 0.0
    %728 = vmatpush1.msra.mxu0 0.0
    %729 = vmatprep.subr.mxu0 0.0
    %730 = vmatpush1.msra.mxu0 0.0
    %731 = vmatprep.subr.mxu0 0.0
    %732 = vmatpush1.msra.mxu0 0.0
    %733 = vmatprep.subr.mxu0 0.0
    %734 = vmatpush1.msra.mxu0 0.0
    %735 = vmatprep.subr.mxu0 0.0
    %736 = vmatpush1.msra.mxu0 0.0
    %737 = vmatprep.subr.mxu0 0.0
    %738 = vmatpush1.msra.mxu0 0.0
    %739 = vmatprep.subr.mxu0 0.0
    %740 = vmatpush1.msra.mxu0 0.0
    %741 = vmatprep.subr.mxu0 0.0
    %742 = vmatpush1.msra.mxu0 0.0
    %743 = vmatprep.subr.mxu0 0.0
    %744 = vmatpush1.msra.mxu0 0.0
    %745 = vmatprep.subr.mxu0 0.0
    %746 = vmatpush1.msra.mxu0 0.0
    %747 = vmatprep.mubr.f32.mxu0 0.0
    %748 = vmatmul.mubr.f32.gmra.mrb[0].mxu0 %v618
    %v749 = vpop.f32.mrb[0].mxu0
    %v750 = vadd.f32 0.0, %v749
    %v751 = vpop.f32.mrb[0].mxu0
    %v752 = vadd.f32 0.0, %v751
    %753 = vdwg.mxu0
    %754 = vmatprep.subr.mxu0 %v622
    %755 = vmatpush1.msra.mxu0 %v621
    %756 = vmatprep.subr.mxu0 %v626
    %757 = vmatpush1.msra.mxu0 %v625
    %758 = vmatprep.subr.mxu0 %v630
    %759 = vmatpush1.msra.mxu0 %v629
    %760 = vmatprep.subr.mxu0 %v634
    %761 = vmatpush1.msra.mxu0 %v633
    %762 = vmatprep.subr.mxu0 %v638
    %763 = vmatpush1.msra.mxu0 %v637
    %764 = vmatprep.subr.mxu0 %v642
    %765 = vmatpush1.msra.mxu0 %v641
    %766 = vmatprep.subr.mxu0 %v646
    %767 = vmatpush1.msra.mxu0 %v645
    %768 = vmatprep.subr.mxu0 %v650
    %769 = vmatpush1.msra.mxu0 %v649
    %770 = vmatprep.subr.mxu0 %v654
    %771 = vmatpush1.msra.mxu0 %v653
    %772 = vmatprep.subr.mxu0 %v658
    %773 = vmatpush1.msra.mxu0 %v657
    %774 = vmatprep.subr.mxu0 %v662
    %775 = vmatpush1.msra.mxu0 %v661
    %776 = vmatprep.subr.mxu0 %v666
    %777 = vmatpush1.msra.mxu0 %v665
    %778 = vmatprep.subr.mxu0 %v670
    %779 = vmatpush1.msra.mxu0 %v669
    %780 = vmatprep.subr.mxu0 %v674
    %781 = vmatpush1.msra.mxu0 %v673
    %782 = vmatprep.subr.mxu0 %v678
    %783 = vmatpush1.msra.mxu0 %v677
    %784 = vmatprep.subr.mxu0 %v682
    %785 = vmatpush1.msra.mxu0 %v681
    %786 = vmatprep.subr.mxu0 0.0
    %787 = vmatpush1.msra.mxu0 0.0
    %788 = vmatprep.subr.mxu0 0.0
    %789 = vmatpush1.msra.mxu0 0.0
    %790 = vmatprep.subr.mxu0 0.0
    %791 = vmatpush1.msra.mxu0 0.0
    %792 = vmatprep.subr.mxu0 0.0
    %793 = vmatpush1.msra.mxu0 0.0
    %794 = vmatprep.subr.mxu0 0.0
    %795 = vmatpush1.msra.mxu0 0.0
    %796 = vmatprep.subr.mxu0 0.0
    %797 = vmatpush1.msra.mxu0 0.0
    %798 = vmatprep.subr.mxu0 0.0
    %799 = vmatpush1.msra.mxu0 0.0
    %800 = vmatprep.subr.mxu0 0.0
    %801 = vmatpush1.msra.mxu0 0.0
    %802 = vmatprep.subr.mxu0 0.0
    %803 = vmatpush1.msra.mxu0 0.0
    %804 = vmatprep.subr.mxu0 0.0
    %805 = vmatpush1.msra.mxu0 0.0
    %806 = vmatprep.subr.mxu0 0.0
    %807 = vmatpush1.msra.mxu0 0.0
    %808 = vmatprep.subr.mxu0 0.0
    %809 = vmatpush1.msra.mxu0 0.0
    %810 = vmatprep.subr.mxu0 0.0
    %811 = vmatpush1.msra.mxu0 0.0
    %812 = vmatprep.subr.mxu0 0.0
    %813 = vmatpush1.msra.mxu0 0.0
    %814 = vmatprep.subr.mxu0 0.0
    %815 = vmatpush1.msra.mxu0 0.0
    %816 = vmatprep.subr.mxu0 0.0
    %817 = vmatpush1.msra.mxu0 0.0
    %818 = vmatprep.mubr.f32.mxu0 0.0
    %819 = vmatmul.mubr.f32.gmra.mrb[0].mxu0 %v618
    %v820 = vpop.f32.mrb[0].mxu0
    %v821 = vadd.f32 0.0, %v820
    %v822 = vpop.f32.mrb[0].mxu0
    %v823 = vadd.f32 0.0, %v822
    %824 = vdwg.mxu0
    %v825 = vld [vmem:[#allocation2 + $0x720] sm:$0xff]
    %v826 = vld [vmem:[#allocation2 + $0x740] sm:$0xff]
    %v827 = vld [vmem:[#allocation2 + $0x7f0] ss:$0 sm:$0xff]
    %vm828 = vcmask 261120
    %v830 = vsel %vm828, %v825, 0
    %v833 = vsel %vm828, %v826, 0
    %835 = vmatprep.subr.mxu0 0.0
    %836 = vmatpush1.msra.mxu0 %v750
    %837 = vmatprep.subr.mxu0 0.0
    %838 = vmatpush1.msra.mxu0 %v752
    %839 = vmatprep.subr.mxu0 0.0
    %840 = vmatpush1.msra.mxu0 %v821
    %841 = vmatprep.subr.mxu0 0.0
    %842 = vmatpush1.msra.mxu0 %v823
    %843 = vmatprep.subr.mxu0 0.0
    %844 = vmatpush1.msra.mxu0 0.0
    %845 = vmatprep.subr.mxu0 0.0
    %846 = vmatpush1.msra.mxu0 0.0
    %847 = vmatprep.subr.mxu0 0.0
    %848 = vmatpush1.msra.mxu0 0.0
    %849 = vmatprep.subr.mxu0 0.0
    %850 = vmatpush1.msra.mxu0 0.0
    %851 = vmatprep.subr.mxu0 0.0
    %852 = vmatpush1.msra.mxu0 0.0
    %853 = vmatprep.subr.mxu0 0.0
    %854 = vmatpush1.msra.mxu0 0.0
    %855 = vmatprep.subr.mxu0 0.0
    %856 = vmatpush1.msra.mxu0 0.0
    %857 = vmatprep.subr.mxu0 0.0
    %858 = vmatpush1.msra.mxu0 0.0
    %859 = vmatprep.subr.mxu0 0.0
    %860 = vmatpush1.msra.mxu0 0.0
    %861 = vmatprep.subr.mxu0 0.0
    %862 = vmatpush1.msra.mxu0 0.0
    %863 = vmatprep.subr.mxu0 0.0
    %864 = vmatpush1.msra.mxu0 0.0
    %865 = vmatprep.subr.mxu0 0.0
    %866 = vmatpush1.msra.mxu0 0.0
    %867 = vmatprep.subr.mxu0 0.0
    %868 = vmatpush1.msra.mxu0 0.0
    %869 = vmatprep.subr.mxu0 0.0
    %870 = vmatpush1.msra.mxu0 0.0
    %871 = vmatprep.subr.mxu0 0.0
    %872 = vmatpush1.msra.mxu0 0.0
    %873 = vmatprep.subr.mxu0 0.0
    %874 = vmatpush1.msra.mxu0 0.0
    %875 = vmatprep.subr.mxu0 0.0
    %876 = vmatpush1.msra.mxu0 0.0
    %877 = vmatprep.subr.mxu0 0.0
    %878 = vmatpush1.msra.mxu0 0.0
    %879 = vmatprep.subr.mxu0 0.0
    %880 = vmatpush1.msra.mxu0 0.0
    %881 = vmatprep.subr.mxu0 0.0
    %882 = vmatpush1.msra.mxu0 0.0
    %883 = vmatprep.subr.mxu0 0.0
    %884 = vmatpush1.msra.mxu0 0.0
    %885 = vmatprep.subr.mxu0 0.0
    %886 = vmatpush1.msra.mxu0 0.0
    %887 = vmatprep.subr.mxu0 0.0
    %888 = vmatpush1.msra.mxu0 0.0
    %889 = vmatprep.subr.mxu0 0.0
    %890 = vmatpush1.msra.mxu0 0.0
    %891 = vmatprep.subr.mxu0 0.0
    %892 = vmatpush1.msra.mxu0 0.0
    %893 = vmatprep.subr.mxu0 0.0
    %894 = vmatpush1.msra.mxu0 0.0
    %895 = vmatprep.subr.mxu0 0.0
    %896 = vmatpush1.msra.mxu0 0.0
    %897 = vmatprep.subr.mxu0 0.0
    %898 = vmatpush1.msra.mxu0 0.0
    %899 = vmatprep.mubr.f32.mxu0 0.0
    %900 = vmatmul.mubr.f32.gmra.mrb[0].mxu0 %v830
    %v901 = vpop.f32.mrb[0].mxu0
    %v902 = vadd.f32 %v827, %v901
    %v903 = vpop.f32.mrb[0].mxu0
    %904 = vmatprep.mubr.f32.mxu0 0.0
    %905 = vmatmul.mubr.f32.gmra.mrb[0].mxu0 %v833
    %v906 = vpop.f32.mrb[0].mxu0
    %v907 = vadd.f32 %v827, %v906
    %v908 = vpop.f32.mrb[0].mxu0
    %909 = vdwg.mxu0
    %v910 = vmax.f32 %v902, 0.0
    %v911 = vmax.f32 %v907, 0.0
    %v912 = vld [vmem:[#allocation2 + $0x4c0] sm:$0xff]
    %v913 = vld [vmem:[#allocation2 + $0x4c8] sm:$0xff]
    %v914 = vld [vmem:[#allocation2 + $0x4d0] sm:$0xff]
    %v915 = vld [vmem:[#allocation2 + $0x4d8] sm:$0xff]
    %v916 = vld [vmem:[#allocation2 + $0x4e0] sm:$0xff]
    %v917 = vld [vmem:[#allocation2 + $0x4e8] sm:$0xff]
    %v918 = vld [vmem:[#allocation2 + $0x4f0] sm:$0xff]
    %v919 = vld [vmem:[#allocation2 + $0x4f8] sm:$0xff]
    %v920 = vld [vmem:[#allocation2 + $0x500] sm:$0xff]
    %v921 = vld [vmem:[#allocation2 + $0x508] sm:$0xff]
    %v922 = vld [vmem:[#allocation2 + $0x510] sm:$0xff]
    %v923 = vld [vmem:[#allocation2 + $0x518] sm:$0xff]
    %v924 = vld [vmem:[#allocation2 + $0x520] sm:$0xff]
    %v925 = vld [vmem:[#allocation2 + $0x528] sm:$0xff]
    %v926 = vld [vmem:[#allocation2 + $0x530] sm:$0xff]
    %v927 = vld [vmem:[#allocation2 + $0x538] sm:$0xff]
    %v928 = vld [vmem:[#allocation2 + $0x540] sm:$0xff]
    %v929 = vld [vmem:[#allocation2 + $0x548] sm:$0xff]
    %v930 = vld [vmem:[#allocation2 + $0x550] sm:$0xff]
    %v931 = vld [vmem:[#allocation2 + $0x558] sm:$0xff]
    %v932 = vld [vmem:[#allocation2 + $0x560] sm:$0xff]
    %v933 = vld [vmem:[#allocation2 + $0x568] sm:$0xff]
    %v934 = vld [vmem:[#allocation2 + $0x570] sm:$0xff]
    %v935 = vld [vmem:[#allocation2 + $0x578] sm:$0xff]
    %v936 = vld [vmem:[#allocation2 + $0x580] sm:$0xff]
    %v937 = vld [vmem:[#allocation2 + $0x588] sm:$0xff]
    %v938 = vld [vmem:[#allocation2 + $0x590] sm:$0xff]
    %v939 = vld [vmem:[#allocation2 + $0x598] sm:$0xff]
    %v940 = vld [vmem:[#allocation2 + $0x5a0] sm:$0xff]
    %v941 = vld [vmem:[#allocation2 + $0x5a8] sm:$0xff]
    %v942 = vld [vmem:[#allocation2 + $0x5b0] sm:$0xff]
    %v943 = vld [vmem:[#allocation2 + $0x5b8] sm:$0xff]
    %v944 = vld [vmem:[#allocation2 + $0x5c0] sm:$0xff]
    %v945 = vld [vmem:[#allocation2 + $0x5c8] sm:$0xff]
    %v946 = vld [vmem:[#allocation2 + $0x5d0] sm:$0xff]
    %v947 = vld [vmem:[#allocation2 + $0x5d8] sm:$0xff]
    %v948 = vld [vmem:[#allocation2 + $0x5e0] sm:$0xff]
    %v949 = vld [vmem:[#allocation2 + $0x5e8] sm:$0xff]
    %v950 = vld [vmem:[#allocation2 + $0x5f0] sm:$0xff]
    %v951 = vld [vmem:[#allocation2 + $0x5f8] sm:$0xff]
    %v952 = vld [vmem:[#allocation2 + $0x600] sm:$0xff]
    %v953 = vld [vmem:[#allocation2 + $0x608] sm:$0xff]
    %v954 = vld [vmem:[#allocation2 + $0x610] sm:$0xff]
    %v955 = vld [vmem:[#allocation2 + $0x618] sm:$0xff]
    %v956 = vld [vmem:[#allocation2 + $0x620] sm:$0xff]
    %v957 = vld [vmem:[#allocation2 + $0x628] sm:$0xff]
    %v958 = vld [vmem:[#allocation2 + $0x630] sm:$0xff]
    %v959 = vld [vmem:[#allocation2 + $0x638] sm:$0xff]
    %v960 = vld [vmem:[#allocation2 + $0x640] sm:$0xff]
    %v961 = vld [vmem:[#allocation2 + $0x648] sm:$0xff]
    %v962 = vld [vmem:[#allocation2 + $0x650] sm:$0xff]
    %v963 = vld [vmem:[#allocation2 + $0x658] sm:$0xff]
    %v964 = vld [vmem:[#allocation2 + $0x660] sm:$0xff]
    %v965 = vld [vmem:[#allocation2 + $0x668] sm:$0xff]
    %v966 = vld [vmem:[#allocation2 + $0x670] sm:$0xff]
    %v967 = vld [vmem:[#allocation2 + $0x678] sm:$0xff]
    %v968 = vld [vmem:[#allocation2 + $0x680] sm:$0xff]
    %v969 = vld [vmem:[#allocation2 + $0x688] sm:$0xff]
    %v970 = vld [vmem:[#allocation2 + $0x690] sm:$0xff]
    %v971 = vld [vmem:[#allocation2 + $0x698] sm:$0xff]
    %v972 = vld [vmem:[#allocation2 + $0x6a0] sm:$0xff]
    %v973 = vld [vmem:[#allocation2 + $0x6a8] sm:$0xff]
    %v974 = vld [vmem:[#allocation2 + $0x6b0] sm:$0xff]
    %v975 = vld [vmem:[#allocation2 + $0x6b8] sm:$0xff]
    %976 = vmatprep.subr.mxu0 %v913
    %977 = vmatpush1.msra.mxu0 %v912
    %978 = vmatprep.subr.mxu0 %v917
    %979 = vmatpush1.msra.mxu0 %v916
    %980 = vmatprep.subr.mxu0 %v921
    %981 = vmatpush1.msra.mxu0 %v920
    %982 = vmatprep.subr.mxu0 %v925
    %983 = vmatpush1.msra.mxu0 %v924
    %984 = vmatprep.subr.mxu0 %v929
    %985 = vmatpush1.msra.mxu0 %v928
    %986 = vmatprep.subr.mxu0 %v933
    %987 = vmatpush1.msra.mxu0 %v932
    %988 = vmatprep.subr.mxu0 %v937
    %989 = vmatpush1.msra.mxu0 %v936
    %990 = vmatprep.subr.mxu0 %v941
    %991 = vmatpush1.msra.mxu0 %v940
    %992 = vmatprep.subr.mxu0 %v945
    %993 = vmatpush1.msra.mxu0 %v944
    %994 = vmatprep.subr.mxu0 %v949
    %995 = vmatpush1.msra.mxu0 %v948
    %996 = vmatprep.subr.mxu0 %v953
    %997 = vmatpush1.msra.mxu0 %v952
    %998 = vmatprep.subr.mxu0 %v957
    %999 = vmatpush1.msra.mxu0 %v956
    %1000 = vmatprep.subr.mxu0 %v961
    %1001 = vmatpush1.msra.mxu0 %v960
    %1002 = vmatprep.subr.mxu0 %v965
    %1003 = vmatpush1.msra.mxu0 %v964
    %1004 = vmatprep.subr.mxu0 %v969
    %1005 = vmatpush1.msra.mxu0 %v968
    %1006 = vmatprep.subr.mxu0 %v973
    %1007 = vmatpush1.msra.mxu0 %v972
    %1008 = vmatprep.subr.mxu0 0.0
    %1009 = vmatpush1.msra.mxu0 0.0
    %1010 = vmatprep.subr.mxu0 0.0
    %1011 = vmatpush1.msra.mxu0 0.0
    %1012 = vmatprep.subr.mxu0 0.0
    %1013 = vmatpush1.msra.mxu0 0.0
    %1014 = vmatprep.subr.mxu0 0.0
    %1015 = vmatpush1.msra.mxu0 0.0
    %1016 = vmatprep.subr.mxu0 0.0
    %1017 = vmatpush1.msra.mxu0 0.0
    %1018 = vmatprep.subr.mxu0 0.0
    %1019 = vmatpush1.msra.mxu0 0.0
    %1020 = vmatprep.subr.mxu0 0.0
    %1021 = vmatpush1.msra.mxu0 0.0
    %1022 = vmatprep.subr.mxu0 0.0
    %1023 = vmatpush1.msra.mxu0 0.0
    %1024 = vmatprep.subr.mxu0 0.0
    %1025 = vmatpush1.msra.mxu0 0.0
    %1026 = vmatprep.subr.mxu0 0.0
    %1027 = vmatpush1.msra.mxu0 0.0
    %1028 = vmatprep.subr.mxu0 0.0
    %1029 = vmatpush1.msra.mxu0 0.0
    %1030 = vmatprep.subr.mxu0 0.0
    %1031 = vmatpush1.msra.mxu0 0.0
    %1032 = vmatprep.subr.mxu0 0.0
    %1033 = vmatpush1.msra.mxu0 0.0
    %1034 = vmatprep.subr.mxu0 0.0
    %1035 = vmatpush1.msra.mxu0 0.0
    %1036 = vmatprep.subr.mxu0 0.0
    %1037 = vmatpush1.msra.mxu0 0.0
    %1038 = vmatprep.subr.mxu0 0.0
    %1039 = vmatpush1.msra.mxu0 0.0
    %1040 = vmatprep.mubr.f32.mxu0 0.0
    %1041 = vmatmul.mubr.f32.gmra.mrb[0].mxu0 %v910
    %v1042 = vpop.f32.mrb[0].mxu0
    %v1043 = vadd.f32 0.0, %v1042
    %v1044 = vpop.f32.mrb[0].mxu0
    %v1045 = vadd.f32 0.0, %v1044
    %1046 = vmatprep.mubr.f32.mxu0 0.0
    %1047 = vmatmul.mubr.f32.gmra.mrb[0].mxu0 %v911
    %v1048 = vpop.f32.mrb[0].mxu0
    %v1049 = vadd.f32 0.0, %v1048
    %v1050 = vpop.f32.mrb[0].mxu0
    %v1051 = vadd.f32 0.0, %v1050
    %1052 = vdwg.mxu0
    %1053 = vmatprep.subr.mxu0 %v915
    %1054 = vmatpush1.msra.mxu0 %v914
    %1055 = vmatprep.subr.mxu0 %v919
    %1056 = vmatpush1.msra.mxu0 %v918
    %1057 = vmatprep.subr.mxu0 %v923
    %1058 = vmatpush1.msra.mxu0 %v922
    %1059 = vmatprep.subr.mxu0 %v927
    %1060 = vmatpush1.msra.mxu0 %v926
    %1061 = vmatprep.subr.mxu0 %v931
    %1062 = vmatpush1.msra.mxu0 %v930
    %1063 = vmatprep.subr.mxu0 %v935
    %1064 = vmatpush1.msra.mxu0 %v934
    %1065 = vmatprep.subr.mxu0 %v939
    %1066 = vmatpush1.msra.mxu0 %v938
    %1067 = vmatprep.subr.mxu0 %v943
    %1068 = vmatpush1.msra.mxu0 %v942
    %1069 = vmatprep.subr.mxu0 %v947
    %1070 = vmatpush1.msra.mxu0 %v946
    %1071 = vmatprep.subr.mxu0 %v951
    %1072 = vmatpush1.msra.mxu0 %v950
    %1073 = vmatprep.subr.mxu0 %v955
    %1074 = vmatpush1.msra.mxu0 %v954
    %1075 = vmatprep.subr.mxu0 %v959
    %1076 = vmatpush1.msra.mxu0 %v958
    %1077 = vmatprep.subr.mxu0 %v963
    %1078 = vmatpush1.msra.mxu0 %v962
    %1079 = vmatprep.subr.mxu0 %v967
    %1080 = vmatpush1.msra.mxu0 %v966
    %1081 = vmatprep.subr.mxu0 %v971
    %1082 = vmatpush1.msra.mxu0 %v970
    %1083 = vmatprep.subr.mxu0 %v975
    %1084 = vmatpush1.msra.mxu0 %v974
    %1085 = vmatprep.subr.mxu0 0.0
    %1086 = vmatpush1.msra.mxu0 0.0
    %1087 = vmatprep.subr.mxu0 0.0
    %1088 = vmatpush1.msra.mxu0 0.0
    %1089 = vmatprep.subr.mxu0 0.0
    %1090 = vmatpush1.msra.mxu0 0.0
    %1091 = vmatprep.subr.mxu0 0.0
    %1092 = vmatpush1.msra.mxu0 0.0
    %1093 = vmatprep.subr.mxu0 0.0
    %1094 = vmatpush1.msra.mxu0 0.0
    %1095 = vmatprep.subr.mxu0 0.0
    %1096 = vmatpush1.msra.mxu0 0.0
    %1097 = vmatprep.subr.mxu0 0.0
    %1098 = vmatpush1.msra.mxu0 0.0
    %1099 = vmatprep.subr.mxu0 0.0
    %1100 = vmatpush1.msra.mxu0 0.0
    %1101 = vmatprep.subr.mxu0 0.0
    %1102 = vmatpush1.msra.mxu0 0.0
    %1103 = vmatprep.subr.mxu0 0.0
    %1104 = vmatpush1.msra.mxu0 0.0
    %1105 = vmatprep.subr.mxu0 0.0
    %1106 = vmatpush1.msra.mxu0 0.0
    %1107 = vmatprep.subr.mxu0 0.0
    %1108 = vmatpush1.msra.mxu0 0.0
    %1109 = vmatprep.subr.mxu0 0.0
    %1110 = vmatpush1.msra.mxu0 0.0
    %1111 = vmatprep.subr.mxu0 0.0
    %1112 = vmatpush1.msra.mxu0 0.0
    %1113 = vmatprep.subr.mxu0 0.0
    %1114 = vmatpush1.msra.mxu0 0.0
    %1115 = vmatprep.subr.mxu0 0.0
    %1116 = vmatpush1.msra.mxu0 0.0
    %1117 = vmatprep.mubr.f32.mxu0 0.0
    %1118 = vmatmul.mubr.f32.gmra.mrb[0].mxu0 %v910
    %v1119 = vpop.f32.mrb[0].mxu0
    %v1120 = vadd.f32 0.0, %v1119
    %v1121 = vpop.f32.mrb[0].mxu0
    %v1122 = vadd.f32 0.0, %v1121
    %1123 = vmatprep.mubr.f32.mxu0 0.0
    %1124 = vmatmul.mubr.f32.gmra.mrb[0].mxu0 %v911
    %v1125 = vpop.f32.mrb[0].mxu0
    %v1126 = vadd.f32 0.0, %v1125
    %v1127 = vpop.f32.mrb[0].mxu0
    %v1128 = vadd.f32 0.0, %v1127
    %1129 = vdwg.mxu0
    %v1130 = vld [vmem:[#allocation2 + $0x760] sm:$0xff]
    %v1131 = vld [vmem:[#allocation2 + $0x780] sm:$0xff]
    %v1132 = vld [vmem:[#allocation2 + $0x7a0] sm:$0xff]
    %v1133 = vld [vmem:[#allocation2 + $0x7c0] sm:$0xff]
    %v1134 = vld [vmem:[#allocation2 + $0x7f8] ss:$0 sm:$0xff]
    %v1136 = vsel %vm544, %v1130, 0
    %v1139 = vsel %vm544, %v1131, 0
    %v1142 = vsel %vm544, %v1132, 0
    %v1145 = vsel %vm544, %v1133, 0
    %1147 = vmatprep.subr.mxu0 0.0
    %1148 = vmatpush1.msra.mxu0 %v1043
    %1149 = vmatprep.subr.mxu0 0.0
    %1150 = vmatpush1.msra.mxu0 %v1049
    %1151 = vmatprep.subr.mxu0 0.0
    %1152 = vmatpush1.msra.mxu0 %v1045
    %1153 = vmatprep.subr.mxu0 0.0
    %1154 = vmatpush1.msra.mxu0 %v1051
    %1155 = vmatprep.subr.mxu0 0.0
    %1156 = vmatpush1.msra.mxu0 %v1120
    %1157 = vmatprep.subr.mxu0 0.0
    %1158 = vmatpush1.msra.mxu0 %v1126
    %1159 = vmatprep.subr.mxu0 0.0
    %1160 = vmatpush1.msra.mxu0 %v1122
    %1161 = vmatprep.subr.mxu0 0.0
    %1162 = vmatpush1.msra.mxu0 %v1128
    %1163 = vmatprep.subr.mxu0 0.0
    %1164 = vmatpush1.msra.mxu0 0.0
    %1165 = vmatprep.subr.mxu0 0.0
    %1166 = vmatpush1.msra.mxu0 0.0
    %1167 = vmatprep.subr.mxu0 0.0
    %1168 = vmatpush1.msra.mxu0 0.0
    %1169 = vmatprep.subr.mxu0 0.0
    %1170 = vmatpush1.msra.mxu0 0.0
    %1171 = vmatprep.subr.mxu0 0.0
    %1172 = vmatpush1.msra.mxu0 0.0
    %1173 = vmatprep.subr.mxu0 0.0
    %1174 = vmatpush1.msra.mxu0 0.0
    %1175 = vmatprep.subr.mxu0 0.0
    %1176 = vmatpush1.msra.mxu0 0.0
    %1177 = vmatprep.subr.mxu0 0.0
    %1178 = vmatpush1.msra.mxu0 0.0
    %1179 = vmatprep.subr.mxu0 0.0
    %1180 = vmatpush1.msra.mxu0 0.0
    %1181 = vmatprep.subr.mxu0 0.0
    %1182 = vmatpush1.msra.mxu0 0.0
    %1183 = vmatprep.subr.mxu0 0.0
    %1184 = vmatpush1.msra.mxu0 0.0
    %1185 = vmatprep.subr.mxu0 0.0
    %1186 = vmatpush1.msra.mxu0 0.0
    %1187 = vmatprep.subr.mxu0 0.0
    %1188 = vmatpush1.msra.mxu0 0.0
    %1189 = vmatprep.subr.mxu0 0.0
    %1190 = vmatpush1.msra.mxu0 0.0
    %1191 = vmatprep.subr.mxu0 0.0
    %1192 = vmatpush1.msra.mxu0 0.0
    %1193 = vmatprep.subr.mxu0 0.0
    %1194 = vmatpush1.msra.mxu0 0.0
    %1195 = vmatprep.subr.mxu0 0.0
    %1196 = vmatpush1.msra.mxu0 0.0
    %1197 = vmatprep.subr.mxu0 0.0
    %1198 = vmatpush1.msra.mxu0 0.0
    %1199 = vmatprep.subr.mxu0 0.0
    %1200 = vmatpush1.msra.mxu0 0.0
    %1201 = vmatprep.subr.mxu0 0.0
    %1202 = vmatpush1.msra.mxu0 0.0
    %1203 = vmatprep.subr.mxu0 0.0
    %1204 = vmatpush1.msra.mxu0 0.0
    %1205 = vmatprep.subr.mxu0 0.0
    %1206 = vmatpush1.msra.mxu0 0.0
    %1207 = vmatprep.subr.mxu0 0.0
    %1208 = vmatpush1.msra.mxu0 0.0
    %1209 = vmatprep.subr.mxu0 0.0
    %1210 = vmatpush1.msra.mxu0 0.0
    %1211 = vmatprep.mubr.f32.mxu0 0.0
    %1212 = vmatmul.mubr.f32.gmra.mrb[0].mxu0 %v1136
    %v1213 = vpop.f32.mrb[0].mxu0
    %v1214 = vadd.f32 %v1134, %v1213
    %v1215 = vpop.f32.mrb[0].mxu0
    %1216 = vmatprep.mubr.f32.mxu0 0.0
    %1217 = vmatmul.mubr.f32.gmra.mrb[0].mxu0 %v1139
    %v1218 = vpop.f32.mrb[0].mxu0
    %v1219 = vadd.f32 %v1134, %v1218
    %v1220 = vpop.f32.mrb[0].mxu0
    %1221 = vmatprep.mubr.f32.mxu0 0.0
    %1222 = vmatmul.mubr.f32.gmra.mrb[0].mxu0 %v1142
    %v1223 = vpop.f32.mrb[0].mxu0
    %v1224 = vadd.f32 %v1134, %v1223
    %v1225 = vpop.f32.mrb[0].mxu0
    %1226 = vmatprep.mubr.f32.mxu0 0.0
    %1227 = vmatmul.mubr.f32.gmra.mrb[0].mxu0 %v1145
    %v1228 = vpop.f32.mrb[0].mxu0
    %v1229 = vadd.f32 %v1134, %v1228
    %v1230 = vpop.f32.mrb[0].mxu0
    %1231 = vdwg.mxu0
    %v1232 = vmax.f32 %v1214, 0.0
    %v1233 = vmax.f32 %v1219, 0.0
    %v1234 = vmax.f32 %v1224, 0.0
    %v1235 = vmax.f32 %v1229, 0.0
    %1236 = vst [vmem:[%s2] sm:$0xff] %v1232
    %1237 = vst [vmem:[%s2 + $0x8] sm:$0xff] %v1233
    %1238 = vst [vmem:[%s2 + $0x10] sm:$0xff] %v1234
    %1239 = vst [vmem:[%s2 + $0x18] sm:$0xff] %v1235
    // Predicated region
    $region14: #{forward.1} parent=1 // pred_check
      _
    $region15: #{forward.1} parent=1 // pred_check_branch
      %1241 = sbr.rel (0) target = $region17
    $region16: #{forward.1} parent=1 // pred_region
      _
    $region17: #{forward.1} parent=1 // pred_fallthru
      _
    // Predicated region
    $region18: #{forward.1} parent=1 // pred_check
      _
    $region19: #{forward.1} parent=1 // pred_check_branch
      %1243 = sbr.rel (0) target = $region21
    $region20: #{forward.1} parent=1 // pred_region
      _
    $region21: #{forward.1} parent=1 // pred_fallthru
      _
    %1244 = vsyncpa [#allocation3], 1

</llo_original>
